<compile_context>
chip_gen: v7x
topology: tpu7x:2x2x1
jax: 0.10.0
libtpu: 0.0.40
codegen_flags: <defaults>
</compile_context>

<pallas_src>
import jax
import jax.numpy as jnp
from jax.experimental import pallas as pl
from jax.experimental.pallas import tpu as pltpu


def _round_up(a, m):
    return ((a + m - 1) // m) * m


def _fvsbn_kernel(j_ids_ref, k_ids_ref, x_ref, w_ref, b_ref, o_ref):
    """One (batch-block i, triangular-step s) grid point.

    j_ids_ref/k_ids_ref : SMEM int32 (T,)  flattened (j, k<=j) schedule
    x_ref : (N, tm, t) bf16  resident X panel for batch block i (all K blocks)
    w_ref : (t, t)     bf16  packed strictly-causal weight block (k, j)
    b_ref : (1, t)     f32   bias block j
    o_ref : (tm, t)    f32   output block (i, j); resident across its k steps
    """
    s = pl.program_id(1)
    k = k_ids_ref[s]

    # First reduction step of this output block: fold the bias into the init.
    @pl.when(k == 0)
    def _():
        o_ref[...] = jnp.broadcast_to(b_ref[...], o_ref.shape)

    # Accumulate x[:, k*t:(k+1)*t] @ W[k*t:(k+1)*t, j*t:(j+1)*t] (MXU, f32 acc).
    o_ref[...] += jnp.dot(x_ref[k], w_ref[...],
                          preferred_element_type=jnp.float32)


def make_fvsbn_forward(w_packed, bias, *, feature_tile=None):
    """Build a jitted FVSBN forward.

    All weight/bias padding, bf16 casting and the triangular block schedule are
    computed ONCE here (hoisted out of the per-call hot path).  The returned
    callable takes x_flat of shape (B, D) and returns (B, D) float32 whose
    column i equals the i-th (B, 1) output of the PyTorch module.
    """
    D = int(w_packed.shape[0])
    assert w_packed.shape == (D, D) and bias.shape == (1, D)

    # Feature tile shared by the output-column (j) and reduction (k) axes.
    if feature_tile is not None:
        t = int(feature_tile)
        assert t % 128 == 0
    elif D <= 1024:
        t = _round_up(D, 128)          # single feature block -> 1 grid step per i
    else:
        t = 512                        # big tiles: fewer steps, still tiny VMEM
    D_pad = _round_up(D, t)
    N = D_pad // t

    # Pre-padded, pre-cast streamed operands (done once, not per forward call).
    w_p = jnp.zeros((D_pad, D_pad), jnp.bfloat16).at[:D, :D].set(
        w_packed.astype(jnp.bfloat16))
    b_p = jnp.zeros((1, D_pad), jnp.float32).at[:, :D].set(
        bias.astype(jnp.float32))

    # Flattened strictly-triangular (j, k<=j) schedule: the structurally-zero
    # W blocks (k > j) never become grid steps at all.
    pairs = [(j, k) for j in range(N) for k in range(j + 1)]
    j_ids = jnp.asarray([p[0] for p in pairs], dtype=jnp.int32)
    k_ids = jnp.asarray([p[1] for p in pairs], dtype=jnp.int32)
    T = len(pairs)

    def forward(x_flat):
        B = x_flat.shape[0]
        # Batch tile: multiple of 8 that minimizes padding, capped at 256.
        n_m = -(-B // 256)                       # number of M blocks
        tm = _round_up(-(-B // n_m), 8)
        B_pad = n_m * tm

        x_bf = x_flat.astype(jnp.bfloat16)
        if B_pad != B or D_pad != D:
            x_bf = jnp.zeros((B_pad, D_pad), jnp.bfloat16).at[:B, :D].set(x_bf)
        # (N, B_pad, t): K-block-major panels so a batch block's X rows are DMA'd
        # once and stay resident in VMEM across the whole triangular sweep.
        x_panels = x_bf.reshape(B_pad, N, t).transpose(1, 0, 2)

        grid = (n_m, T)

        flops = 2 * B_pad * T * t * t
        bytes_accessed = (
            n_m * (N * tm * t) * 2          # X panels (bf16), once per i block
            + n_m * T * t * t * 2           # triangular W stream (bf16)
            + B_pad * D_pad * 4             # f32 output
            + T * t * 4)                    # bias

        out = pl.pallas_call(
            _fvsbn_kernel,
            out_shape=jax.ShapeDtypeStruct((B_pad, D_pad), jnp.float32),
            grid_spec=pltpu.PrefetchScalarGridSpec(
                num_scalar_prefetch=2,
                grid=grid,
                in_specs=[
                    # Resident X row panel for batch block i (all K blocks).
                    pl.BlockSpec((N, tm, t), lambda i, s, jj, kk: (0, i, 0)),
                    # Strictly-causal packed W block (k, j) from the schedule.
                    pl.BlockSpec((t, t), lambda i, s, jj, kk: (kk[s], jj[s])),
                    # Bias block j.
                    pl.BlockSpec((1, t), lambda i, s, jj, kk: (0, jj[s])),
                ],
                out_specs=pl.BlockSpec((tm, t), lambda i, s, jj, kk: (i, jj[s])),
            ),
            compiler_params=pltpu.CompilerParams(
                # M axis shards across TensorCores (v7x megacore) when n_m >= 2;
                # the flattened triangular axis is a reduction -> "arbitrary".
                dimension_semantics=("parallel", "arbitrary"),
            ),
            cost_estimate=pl.CostEstimate(
                flops=int(flops),
                transcendentals=0,
                bytes_accessed=int(bytes_accessed),
            ),
        )(j_ids, k_ids, x_panels, w_p, b_p)

        return out[:B, :D]

    return jax.jit(forward)


def make_params(key, n_dim):
    """Deterministically build packed weights/bias matching the ModuleList of
    nn.Linear(max(1, i), 1) layers.  w_packed[j, i] is the weight of output
    pixel i on input pixel j (valid only for j < i; zero elsewhere, so layer 0
    which consumes zeros in PyTorch contributes only its bias)."""
    kw, kb = jax.random.split(key)
    w_full = jax.random.uniform(kw, (n_dim, n_dim), jnp.float32, -0.1, 0.1)
    bias = jax.random.uniform(kb, (1, n_dim), jnp.float32, -0.1, 0.1)
    rows = jnp.arange(n_dim)[:, None]   # input index j
    cols = jnp.arange(n_dim)[None, :]   # output index i
    mask = (rows < cols).astype(jnp.float32)
    return w_full * mask, bias


if __name__ == "__main__":
    # Small example: NCHW batch (B=2, C=4, H=16, W=16) -> D = n_dim = 1024.
    B, C, H, W = 2, 4, 16, 16
    n_dim = C * H * W

    key = jax.random.PRNGKey(0)
    kx, kp = jax.random.split(key)
    x = jax.random.normal(kx, (B, C, H, W), jnp.float32)
    w_packed, bias = make_params(kp, n_dim)

    x_flat = x.reshape(B, -1)  # x.view(B, -1) in PyTorch

    # feature_tile=512 -> 2 feature blocks, so the flattened triangular schedule
    # (3 of 4 block pairs) and the resident-X dynamic-k path are exercised.
    fvsbn = make_fvsbn_forward(w_packed, bias, feature_tile=512)
    out = jax.block_until_ready(fvsbn(x_flat))
    assert out.shape == (B, n_dim)

    # Reference uses the same bf16-rounded operands the kernel streams.
    x_bf = x_flat.astype(jnp.bfloat16).astype(jnp.float32)
    w_bf = w_packed.astype(jnp.bfloat16).astype(jnp.float32)
    ref = x_bf @ w_bf + bias
    assert jnp.allclose(out, ref, atol=1e-3, rtol=1e-3), \
        float(jnp.max(jnp.abs(out - ref)))

    # Spot-check the PyTorch list semantics: column i == Linear_i(x[:, :i]),
    # column 0 == bias_0 only.
    for i in (0, 1, 7, 255, 511, n_dim - 1):
        if i == 0:
            col = jnp.broadcast_to(bias[:, 0:1], (B, 1))
        else:
            col = x_bf[:, :i] @ w_bf[:i, i:i + 1] + bias[:, i:i + 1]
        assert jnp.allclose(out[:, i:i + 1], col, atol=1e-3, rtol=1e-3)

    # TODO(synk): FVSBN.sample() is an inherently sequential per-pixel loop and is
    # not part of forward(); not implemented as a kernel.
    print("KERNEL_OK")
</pallas_src>

<mosaic_0001>
module attributes {stable_mosaic.version = 11 : i64} {
  func.func @_fvsbn_kernel(%arg0: i32, %arg1: i32, %arg2: memref<3xi32, #tpu.memory_space<smem>>, %arg3: memref<3xi32, #tpu.memory_space<smem>>, %arg4: memref<2x8x512xbf16, #tpu.memory_space<vmem>>, %arg5: memref<512x512xbf16, #tpu.memory_space<vmem>>, %arg6: memref<1x512xf32, #tpu.memory_space<vmem>>, %arg7: memref<8x512xf32, #tpu.memory_space<vmem>>) attributes {dimension_semantics = [#tpu.dimension_semantics<parallel>, #tpu.dimension_semantics<arbitrary>], iteration_bounds = array<i64: 1, 3>, scalar_prefetch = 2 : i64, scratch_operands = 0 : i64, tpu.core_type = #tpu.core_type<tc>, window_params = [{transform_indices = @transform_0, window_bounds = array<i64: 2, 8, 512>}, {transform_indices = @transform_1, window_bounds = array<i64: 512, 512>}, {transform_indices = @transform_2, window_bounds = array<i64: 1, 512>}, {transform_indices = @transform_3, window_bounds = array<i64: 8, 512>}]} {
    %0 = arith.index_cast %arg1 : i32 to index
    %1 = memref.load %arg3[%0] : memref<3xi32, #tpu.memory_space<smem>>
    %c0_i32 = arith.constant 0 : i32
    %2 = arith.cmpi eq, %1, %c0_i32 : i32
    %3 = arith.extui %2 : i1 to i32
    %c0_i32_0 = arith.constant 0 : i32
    %4 = arith.cmpi ne, %3, %c0_i32_0 : i32
    scf.if %4 {
      %c0_8 = arith.constant 0 : index
      %c0_9 = arith.constant 0 : index
      %13 = vector.load %arg6[%c0_8, %c0_9] : memref<1x512xf32, #tpu.memory_space<vmem>>, vector<1x512xf32>
      %14 = vector.shape_cast %13 : vector<1x512xf32> to vector<1x512xf32>
      %15 = vector.broadcast %14 : vector<1x512xf32> to vector<8x512xf32>
      %c0_10 = arith.constant 0 : index
      %c0_11 = arith.constant 0 : index
      %16 = vector.load %arg7[%c0_10, %c0_11] : memref<8x512xf32, #tpu.memory_space<vmem>>, vector<8x512xf32>
      tpu.vector_store %arg7[%c0_10, %c0_11], %15 {strides = array<i32>} : memref<8x512xf32, #tpu.memory_space<vmem>>, vector<8x512xf32>,
    } else {
    }
    %c0 = arith.constant 0 : index
    %c0_1 = arith.constant 0 : index
    %5 = vector.load %arg7[%c0, %c0_1] : memref<8x512xf32, #tpu.memory_space<vmem>>, vector<8x512xf32>
    %6 = arith.index_cast %1 : i32 to index
    %c0_2 = arith.constant 0 : index
    %c0_3 = arith.constant 0 : index
    %7 = vector.load %arg4[%6, %c0_2, %c0_3] : memref<2x8x512xbf16, #tpu.memory_space<vmem>>, vector<1x8x512xbf16>
    %8 = vector.shape_cast %7 : vector<1x8x512xbf16> to vector<8x512xbf16>
    %c0_4 = arith.constant 0 : index
    %c0_5 = arith.constant 0 : index
    %9 = vector.load %arg5[%c0_4, %c0_5] : memref<512x512xbf16, #tpu.memory_space<vmem>>, vector<512x512xbf16>
    %cst = arith.constant dense<0.000000e+00> : vector<8x512xf32>
    %10 = tpu.matmul %8, %9, %cst {dimension_numbers = #tpu.dot_dimension_numbers<[1], [0], [0], [1], [0, 0, 1, 1], [], []>} : vector<8x512xbf16>, vector<512x512xbf16>, vector<8x512xf32> -> vector<8x512xf32>
    %11 = arith.addf %5, %10 : vector<8x512xf32>
    %c0_6 = arith.constant 0 : index
    %c0_7 = arith.constant 0 : index
    %12 = vector.load %arg7[%c0_6, %c0_7] : memref<8x512xf32, #tpu.memory_space<vmem>>, vector<8x512xf32>
    tpu.vector_store %arg7[%c0_6, %c0_7], %11 {strides = array<i32>} : memref<8x512xf32, #tpu.memory_space<vmem>>, vector<8x512xf32>,
    return
  }
  func.func @transform_0(%arg0: i32, %arg1: i32, %arg2: memref<3xi32, #tpu.memory_space<smem>>, %arg3: memref<3xi32, #tpu.memory_space<smem>>) -> (i32, i32, i32) {
    %c0_i32 = arith.constant 0 : i32
    %c0_i32_0 = arith.constant 0 : i32
    %c0_i32_1 = arith.constant 0 : i32
    return %c0_i32, %arg0, %c0_i32_0 : i32, i32, i32
  }
  func.func @transform_1(%arg0: i32, %arg1: i32, %arg2: memref<3xi32, #tpu.memory_space<smem>>, %arg3: memref<3xi32, #tpu.memory_space<smem>>) -> (i32, i32) {
    %0 = arith.index_cast %arg1 : i32 to index
    %1 = memref.load %arg3[%0] : memref<3xi32, #tpu.memory_space<smem>>
    %2 = arith.index_cast %arg1 : i32 to index
    %3 = memref.load %arg2[%2] : memref<3xi32, #tpu.memory_space<smem>>
    %c0_i32 = arith.constant 0 : i32
    return %1, %3 : i32, i32
  }
  func.func @transform_2(%arg0: i32, %arg1: i32, %arg2: memref<3xi32, #tpu.memory_space<smem>>, %arg3: memref<3xi32, #tpu.memory_space<smem>>) -> (i32, i32) {
    %0 = arith.index_cast %arg1 : i32 to index
    %1 = memref.load %arg2[%0] : memref<3xi32, #tpu.memory_space<smem>>
    %c0_i32 = arith.constant 0 : i32
    %c0_i32_0 = arith.constant 0 : i32
    return %c0_i32, %1 : i32, i32
  }
  func.func @transform_3(%arg0: i32, %arg1: i32, %arg2: memref<3xi32, #tpu.memory_space<smem>>, %arg3: memref<3xi32, #tpu.memory_space<smem>>) -> (i32, i32) {
    %0 = arith.index_cast %arg1 : i32 to index
    %1 = memref.load %arg2[%0] : memref<3xi32, #tpu.memory_space<smem>>
    %c0_i32 = arith.constant 0 : i32
    return %arg0, %1 : i32, i32
  }
}

</mosaic_0001>

<llo_original>
// kernel: forward.1
$region0: #{forward.1}
  #allocation0 [shape = 'u32[]', space=smem, size = 0x4, offset = 0x4, fixed_abs, tag = 'smem constant byte address 0x4 - core index']
  #allocation1 [shape = 'u32[144,128]{1,0:T(1,128)}', space=vmem, size = 0x12000, scoped, tag = 'internal scratch']
  #allocation2 [shape = 's32[1]{0}', space=sflag, size = 0x4, scoped, tag = 'scoped memory for forward.1']
  #allocation3 [shape = 'u8[512]{0}', space=smem, size = 0x200, scoped, tag = 'prefetched SMEM operand 0']
  #allocation4 [shape = 'u8[512]{0}', space=smem, size = 0x200, scoped, tag = 'prefetched SMEM operand 1']
  %s0 = inlined_call_operand.vmem [shape: s32[3], index: 0, kind: input, shape index: {}]
  %s1 = inlined_call_operand.vmem [shape: s32[3], index: 1, kind: input, shape index: {}]
  %s2 = inlined_call_operand.vmem [shape: bf16[2,8,512], index: 2, kind: input, shape index: {}]
  %s3 = inlined_call_operand.vmem [shape: bf16[1024,1024], index: 3, kind: input, shape index: {}]
  %s4 = inlined_call_operand.vmem [shape: f32[1,1024], index: 4, kind: input, shape index: {}]
  %s5 = inlined_call_operand.vmem [shape: f32[8,1024], index: 5, kind: output, shape index: {}]
  %s6 = sld [smem:[#allocation0]]
  $region72: #{forward.1} parent=0
    _
  %s8 = ssub.s32 1, %s6
  %s9 = scalar_select 0, %s8, %s6
  %s10 = sshll.u32 %s0, 4
  %s11 = int_to_ptr.vmem [resolvable:$true] %s10
  %13 = dma.vmem_to_smem %s11, 16, [#allocation3], [#allocation2]
  %s14 = sshll.u32 %s1, 4
  %s15 = int_to_ptr.vmem [resolvable:$true] %s14
  %17 = dma.vmem_to_smem %s15, 16, [#allocation4], [#allocation2]
  %18 = dma.done [#allocation2], 32
  %19 = sfence
  $region1: #{forward.1} parent=0
    #allocation5 [shape = 'u8[1048576]{0}', space=vmem, size = 0x100000, scoped, tag = 'input window, operand 3']
    loop: start=0, step=1, limit=5
    $region2: #{forward.1} parent=1 // loop_pre_header
      _
    $region3: #{forward.1} parent=1 // loop_header
      %s21 = sphi 0, %s25
      %p22 = scmp.ge.s32.totalorder %s21, 5
      %s28 = sphi 0, %s40
      %s29 = sphi 0, %s36
      %s30 = sphi 0, %s28
      %s31 = sphi 0, %s29
      %s32 = sphi 0, %s30
      %s33 = sphi 0, %s31
      %s43 = sphi 0, %s45
      %s46 = sphi 0, %s43
      %s47 = sphi 0, %s46
      %s63 = sphi 0, %s47
      %s75 = sphi 0, %s77
      %s78 = sphi 0, %s75
      %s79 = sphi 0, %s78
      %s95 = sphi 0, %s79
      %s103 = sphi 0, %s105
      %s106 = sphi 0, %s103
      %s107 = sphi 0, %s106
      %s123 = sphi 0, %s107
      %s133 = sphi 0, %s135
      %s136 = sphi 0, %s133
      %s137 = sphi 0, %s136
      %s153 = sphi 0, %s137
    $region4: #{forward.1} parent=1 // loop_header_branch
      %24 = sbr.rel (%p22) target = $region8
    $region5: #{forward.1} parent=1 // loop_body
      %s26 = ssub.s32 %s21, 1
      %s27 = ssub.s32 %s21, 2
      %s34 = sadd.s32 1, %s29
      %p35 = scmp.ge.s32.totalorder %s34, 3
      %s36 = scalar_select %p35, 0, %s34
      %s37 = sadd.s32 1, %s28
      %s38 = scalar_select %p35, %s37, %s28
      %p39 = scmp.ge.s32.totalorder %s38, 1
      %s40 = scalar_select %p39, 0, %s38
      %s41 = ssub.s32 %s28, %s40
      %p42 = scmp.eq.s32.totalorder %s41, 0
      %s44 = sadd.s32 %s43, 1
      %s45 = scalar_select %p42, %s43, %s44
      %p48 = pneg %p42
      %p49 = scmp.eq.s32.totalorder %s21, 2
      %p50 = por %p48, %p49
      %p51 = scmp.ne.s32.totalorder %s43, %s46
      %p52 = scmp.eq.s32.totalorder %s21, 0
      %p53 = por %p51, %p52
      %p54 = scmp.ne.s32.totalorder %s43, %s46
      %p55 = scmp.eq.s32.totalorder %s26, 2
      %p56 = por %p54, %p55
      %p57 = scmp.ne.s32.totalorder %s46, %s47
      %p58 = scmp.eq.s32.totalorder %s26, 0
      %p59 = por %p57, %p58
      %p60 = scmp.ne.s32.totalorder %s46, %s47
      %p61 = scmp.eq.s32.totalorder %s27, 2
      %p62 = por %p60, %p61
      %p64 = scmp.ne.s32.totalorder %s47, %s63
      %p65 = scmp.eq.s32.totalorder %s27, 0
      %p66 = por %p64, %p65
      %s67 = sld [smem:[#allocation4 + %s29]]
      %s68 = sld [smem:[#allocation3 + %s29]]
      %s69 = sld [smem:[#allocation4 + %s36]]
      %s70 = sld [smem:[#allocation3 + %s36]]
      %s71 = ssub.s32 %s67, %s69
      %s72 = ssub.s32 %s68, %s70
      %s73 = sor.u32 %s71, %s72
      %p74 = scmp.eq.s32.totalorder %s73, 0
      %s76 = sadd.s32 %s75, 1
      %s77 = scalar_select %p74, %s75, %s76
      %p80 = pneg %p74
      %p81 = scmp.eq.s32.totalorder %s21, 2
      %p82 = por %p80, %p81
      %p83 = scmp.ne.s32.totalorder %s75, %s78
      %p84 = scmp.eq.s32.totalorder %s21, 0
      %p85 = por %p83, %p84
      %p86 = scmp.ne.s32.totalorder %s75, %s78
      %p87 = scmp.eq.s32.totalorder %s26, 2
      %p88 = por %p86, %p87
      %p89 = scmp.ne.s32.totalorder %s78, %s79
      %p90 = scmp.eq.s32.totalorder %s26, 0
      %p91 = por %p89, %p90
      %p92 = scmp.ne.s32.totalorder %s78, %s79
      %p93 = scmp.eq.s32.totalorder %s27, 2
      %p94 = por %p92, %p93
      %p96 = scmp.ne.s32.totalorder %s79, %s95
      %p97 = scmp.eq.s32.totalorder %s27, 0
      %p98 = por %p96, %p97
      %s99 = sld [smem:[#allocation3 + %s29]]
      %s100 = sld [smem:[#allocation3 + %s36]]
      %s101 = ssub.s32 %s99, %s100
      %p102 = scmp.eq.s32.totalorder %s101, 0
      %s104 = sadd.s32 %s103, 1
      %s105 = scalar_select %p102, %s103, %s104
      %p108 = pneg %p102
      %p109 = scmp.eq.s32.totalorder %s21, 2
      %p110 = por %p108, %p109
      %p111 = scmp.ne.s32.totalorder %s103, %s106
      %p112 = scmp.eq.s32.totalorder %s21, 0
      %p113 = por %p111, %p112
      %p114 = scmp.ne.s32.totalorder %s103, %s106
      %p115 = scmp.eq.s32.totalorder %s26, 2
      %p116 = por %p114, %p115
      %p117 = scmp.ne.s32.totalorder %s106, %s107
      %p118 = scmp.eq.s32.totalorder %s26, 0
      %p119 = por %p117, %p118
      %p120 = scmp.ne.s32.totalorder %s106, %s107
      %p121 = scmp.eq.s32.totalorder %s27, 2
      %p122 = por %p120, %p121
      %p124 = scmp.ne.s32.totalorder %s107, %s123
      %p125 = scmp.eq.s32.totalorder %s27, 0
      %p126 = por %p124, %p125
      %s127 = sld [smem:[#allocation3 + %s29]]
      %s128 = sld [smem:[#allocation3 + %s36]]
      %s129 = ssub.s32 %s28, %s40
      %s130 = ssub.s32 %s127, %s128
      %s131 = sor.u32 %s129, %s130
      %p132 = scmp.eq.s32.totalorder %s131, 0
      %s134 = sadd.s32 %s133, 1
      %s135 = scalar_select %p132, %s133, %s134
      %p138 = pneg %p132
      %p139 = scmp.eq.s32.totalorder %s21, 2
      %p140 = por %p138, %p139
      %p141 = scmp.ne.s32.totalorder %s133, %s136
      %p142 = scmp.eq.s32.totalorder %s21, 0
      %p143 = por %p141, %p142
      %p144 = scmp.ne.s32.totalorder %s133, %s136
      %p145 = scmp.eq.s32.totalorder %s26, 2
      %p146 = por %p144, %p145
      %p147 = scmp.ne.s32.totalorder %s136, %s137
      %p148 = scmp.eq.s32.totalorder %s26, 0
      %p149 = por %p147, %p148
      %p150 = scmp.ne.s32.totalorder %s136, %s137
      %p151 = scmp.eq.s32.totalorder %s27, 2
      %p152 = por %p150, %p151
      %p154 = scmp.ne.s32.totalorder %s137, %s153
      %p155 = scmp.eq.s32.totalorder %s27, 0
      %p156 = por %p154, %p155
      %p157 = scmp.le.s32.totalorder 1, %s21
      %p158 = scmp.lt.s32.totalorder %s21, 4
      %p159 = pnand %p157, %p158
      %p160 = pneg %p159
      // Predicated region
      $region9: #{forward.1} parent=5 // pred_check
        _
      $region10: #{forward.1} parent=5 // pred_check_branch
        %162 = sbr.rel (%p159) target = $region12
      $region11: #{forward.1} parent=5 // pred_region
        %s163 = ssub.s32 %s21, 1
        // Predicated region
        $region13: #{forward.1} parent=11 // pred_check
          %p164 = pneg %p59
        $region14: #{forward.1} parent=11 // pred_check_branch
          %166 = sbr.rel (%p164) target = $region16
        $region15: #{forward.1} parent=11 // pred_region
          %p167 = scmp.lt.s32.totalorder %s30, 0
          %s168 = scalar_select %p167, %s30, 0
          %s169 = smul.addr %s168, 4
          %s170 = smul.addr %s169, 4
          %s171 = scalar_lea.vmem %s2, %s170
        $region16: #{forward.1} parent=11 // pred_fallthru
          _
      $region12: #{forward.1} parent=5 // pred_fallthru
        _
      %p172 = scmp.lt.s32.totalorder %s21, 3
      // Predicated region
      $region17: #{forward.1} parent=5 // pred_check
        %p173 = pneg %p172
      $region18: #{forward.1} parent=5 // pred_check_branch
        %175 = sbr.rel (%p173) target = $region20
      $region19: #{forward.1} parent=5 // pred_region
        // Predicated region
        $region21: #{forward.1} parent=19 // pred_check
          %p176 = pneg %p85
        $region22: #{forward.1} parent=19 // pred_check_branch
          %178 = sbr.rel (%p176) target = $region24
        $region23: #{forward.1} parent=19 // pred_region
          %s179 = sand.u32 %s75, 1
          %s180 = sand.u32 %s75, 1
          %s181 = smul.addr %s180, 1024
          %s182 = scalar_lea.vmem [#allocation5], %s181
          %s183 = sld [smem:[#allocation4 + %s29]]
          %s184 = sld [smem:[#allocation3 + %s29]]
          %s185 = smul.u32 64, %s183
          %s186 = smul.u32 4, %s184
          %s187 = smul.addr %s185, 8
          %s188 = sadd.s32 %s186, %s187
          %s189 = smul.addr %s188, 4
          %s190 = scalar_lea.vmem %s3, %s189
          // Predicated region
          $region25: #{forward.1} parent=23 // pred_check
            _
          $region26: #{forward.1} parent=23 // pred_check_branch
            %192 = sbr.rel (0) target = $region28
          $region27: #{forward.1} parent=23 // pred_region
            // Predicated region
            $region29: #{forward.1} parent=27 // pred_check
              _
            $region30: #{forward.1} parent=27 // pred_check_branch
              %194 = sbr.rel (0) target = $region32
            $region31: #{forward.1} parent=27 // pred_region
              loop: start=0, step=1, limit=1
              $region33: #{forward.1} parent=31 // loop_pre_header
                _
              $region34: #{forward.1} parent=31 // loop_header
                %s196 = sphi 0, %s200
                %p197 = scmp.ge.s32.totalorder %s196, 1
                %s201 = sphi %s190, %s190
                %s202 = sphi %s182, %s182
              $region35: #{forward.1} parent=31 // loop_header_branch
                %199 = sbr.rel (%p197) target = $region39
              $region36: #{forward.1} parent=31 // loop_body
                %v203 = vld [vmem:[%s201] sm:$0xff]
                %204 = vst [vmem:[%s202] sm:$0xff] %v203
                %v205 = vld [vmem:[%s201 + $0x8] sm:$0xff]
                %206 = vst [vmem:[%s202 + $0x8] sm:$0xff] %v205
                %v207 = vld [vmem:[%s201 + $0x20] sm:$0xff]
                %208 = vst [vmem:[%s202 + $0x10] sm:$0xff] %v207
                %v209 = vld [vmem:[%s201 + $0x28] sm:$0xff]
                %210 = vst [vmem:[%s202 + $0x18] sm:$0xff] %v209
                %v211 = vld [vmem:[%s201 + $0x40] sm:$0xff]
                %212 = vst [vmem:[%s202 + $0x20] sm:$0xff] %v211
                %v213 = vld [vmem:[%s201 + $0x48] sm:$0xff]
                %214 = vst [vmem:[%s202 + $0x28] sm:$0xff] %v213
                %v215 = vld [vmem:[%s201 + $0x60] sm:$0xff]
                %216 = vst [vmem:[%s202 + $0x30] sm:$0xff] %v215
                %v217 = vld [vmem:[%s201 + $0x68] sm:$0xff]
                %218 = vst [vmem:[%s202 + $0x38] sm:$0xff] %v217
                %v219 = vld [vmem:[%s201 + $0x80] sm:$0xff]
                %220 = vst [vmem:[%s202 + $0x40] sm:$0xff] %v219
                %v221 = vld [vmem:[%s201 + $0x88] sm:$0xff]
                %222 = vst [vmem:[%s202 + $0x48] sm:$0xff] %v221
                %v223 = vld [vmem:[%s201 + $0xa0] sm:$0xff]
                %224 = vst [vmem:[%s202 + $0x50] sm:$0xff] %v223
                %v225 = vld [vmem:[%s201 + $0xa8] sm:$0xff]
                %226 = vst [vmem:[%s202 + $0x58] sm:$0xff] %v225
                %v227 = vld [vmem:[%s201 + $0xc0] sm:$0xff]
                %228 = vst [vmem:[%s202 + $0x60] sm:$0xff] %v227
                %v229 = vld [vmem:[%s201 + $0xc8] sm:$0xff]
                %230 = vst [vmem:[%s202 + $0x68] sm:$0xff] %v229
                %v231 = vld [vmem:[%s201 + $0xe0] sm:$0xff]
                %232 = vst [vmem:[%s202 + $0x70] sm:$0xff] %v231
                %v233 = vld [vmem:[%s201 + $0xe8] sm:$0xff]
                %234 = vst [vmem:[%s202 + $0x78] sm:$0xff] %v233
                %v235 = vld [vmem:[%s201 + $0x100] sm:$0xff]
                %236 = vst [vmem:[%s202 + $0x80] sm:$0xff] %v235
                %v237 = vld [vmem:[%s201 + $0x108] sm:$0xff]
                %238 = vst [vmem:[%s202 + $0x88] sm:$0xff] %v237
                %v239 = vld [vmem:[%s201 + $0x120] sm:$0xff]
                %240 = vst [vmem:[%s202 + $0x90] sm:$0xff] %v239
                %v241 = vld [vmem:[%s201 + $0x128] sm:$0xff]
                %242 = vst [vmem:[%s202 + $0x98] sm:$0xff] %v241
                %v243 = vld [vmem:[%s201 + $0x140] sm:$0xff]
                %244 = vst [vmem:[%s202 + $0xa0] sm:$0xff] %v243
                %v245 = vld [vmem:[%s201 + $0x148] sm:$0xff]
                %246 = vst [vmem:[%s202 + $0xa8] sm:$0xff] %v245
                %v247 = vld [vmem:[%s201 + $0x160] sm:$0xff]
                %248 = vst [vmem:[%s202 + $0xb0] sm:$0xff] %v247
                %v249 = vld [vmem:[%s201 + $0x168] sm:$0xff]
                %250 = vst [vmem:[%s202 + $0xb8] sm:$0xff] %v249
                %v251 = vld [vmem:[%s201 + $0x180] sm:$0xff]
                %252 = vst [vmem:[%s202 + $0xc0] sm:$0xff] %v251
                %v253 = vld [vmem:[%s201 + $0x188] sm:$0xff]
                %254 = vst [vmem:[%s202 + $0xc8] sm:$0xff] %v253
                %v255 = vld [vmem:[%s201 + $0x1a0] sm:$0xff]
                %256 = vst [vmem:[%s202 + $0xd0] sm:$0xff] %v255
                %v257 = vld [vmem:[%s201 + $0x1a8] sm:$0xff]
                %258 = vst [vmem:[%s202 + $0xd8] sm:$0xff] %v257
                %v259 = vld [vmem:[%s201 + $0x1c0] sm:$0xff]
                %260 = vst [vmem:[%s202 + $0xe0] sm:$0xff] %v259
                %v261 = vld [vmem:[%s201 + $0x1c8] sm:$0xff]
                %262 = vst [vmem:[%s202 + $0xe8] sm:$0xff] %v261
                %v263 = vld [vmem:[%s201 + $0x1e0] sm:$0xff]
                %264 = vst [vmem:[%s202 + $0xf0] sm:$0xff] %v263
                %v265 = vld [vmem:[%s201 + $0x1e8] sm:$0xff]
                %266 = vst [vmem:[%s202 + $0xf8] sm:$0xff] %v265
                %v267 = vld [vmem:[%s201 + $0x200] sm:$0xff]
                %268 = vst [vmem:[%s202 + $0x100] sm:$0xff] %v267
                %v269 = vld [vmem:[%s201 + $0x208] sm:$0xff]
                %270 = vst [vmem:[%s202 + $0x108] sm:$0xff] %v269
                %v271 = vld [vmem:[%s201 + $0x220] sm:$0xff]
                %272 = vst [vmem:[%s202 + $0x110] sm:$0xff] %v271
                %v273 = vld [vmem:[%s201 + $0x228] sm:$0xff]
                %274 = vst [vmem:[%s202 + $0x118] sm:$0xff] %v273
                %v275 = vld [vmem:[%s201 + $0x240] sm:$0xff]
                %276 = vst [vmem:[%s202 + $0x120] sm:$0xff] %v275
                %v277 = vld [vmem:[%s201 + $0x248] sm:$0xff]
                %278 = vst [vmem:[%s202 + $0x128] sm:$0xff] %v277
                %v279 = vld [vmem:[%s201 + $0x260] sm:$0xff]
                %280 = vst [vmem:[%s202 + $0x130] sm:$0xff] %v279
                %v281 = vld [vmem:[%s201 + $0x268] sm:$0xff]
                %282 = vst [vmem:[%s202 + $0x138] sm:$0xff] %v281
                %v283 = vld [vmem:[%s201 + $0x280] sm:$0xff]
                %284 = vst [vmem:[%s202 + $0x140] sm:$0xff] %v283
                %v285 = vld [vmem:[%s201 + $0x288] sm:$0xff]
                %286 = vst [vmem:[%s202 + $0x148] sm:$0xff] %v285
                %v287 = vld [vmem:[%s201 + $0x2a0] sm:$0xff]
                %288 = vst [vmem:[%s202 + $0x150] sm:$0xff] %v287
                %v289 = vld [vmem:[%s201 + $0x2a8] sm:$0xff]
                %290 = vst [vmem:[%s202 + $0x158] sm:$0xff] %v289
                %v291 = vld [vmem:[%s201 + $0x2c0] sm:$0xff]
                %292 = vst [vmem:[%s202 + $0x160] sm:$0xff] %v291
                %v293 = vld [vmem:[%s201 + $0x2c8] sm:$0xff]
                %294 = vst [vmem:[%s202 + $0x168] sm:$0xff] %v293
                %v295 = vld [vmem:[%s201 + $0x2e0] sm:$0xff]
                %296 = vst [vmem:[%s202 + $0x170] sm:$0xff] %v295
                %v297 = vld [vmem:[%s201 + $0x2e8] sm:$0xff]
                %298 = vst [vmem:[%s202 + $0x178] sm:$0xff] %v297
                %v299 = vld [vmem:[%s201 + $0x300] sm:$0xff]
                %300 = vst [vmem:[%s202 + $0x180] sm:$0xff] %v299
                %v301 = vld [vmem:[%s201 + $0x308] sm:$0xff]
                %302 = vst [vmem:[%s202 + $0x188] sm:$0xff] %v301
                %v303 = vld [vmem:[%s201 + $0x320] sm:$0xff]
                %304 = vst [vmem:[%s202 + $0x190] sm:$0xff] %v303
                %v305 = vld [vmem:[%s201 + $0x328] sm:$0xff]
                %306 = vst [vmem:[%s202 + $0x198] sm:$0xff] %v305
                %v307 = vld [vmem:[%s201 + $0x340] sm:$0xff]
                %308 = vst [vmem:[%s202 + $0x1a0] sm:$0xff] %v307
                %v309 = vld [vmem:[%s201 + $0x348] sm:$0xff]
                %310 = vst [vmem:[%s202 + $0x1a8] sm:$0xff] %v309
                %v311 = vld [vmem:[%s201 + $0x360] sm:$0xff]
                %312 = vst [vmem:[%s202 + $0x1b0] sm:$0xff] %v311
                %v313 = vld [vmem:[%s201 + $0x368] sm:$0xff]
                %314 = vst [vmem:[%s202 + $0x1b8] sm:$0xff] %v313
                %v315 = vld [vmem:[%s201 + $0x380] sm:$0xff]
                %316 = vst [vmem:[%s202 + $0x1c0] sm:$0xff] %v315
                %v317 = vld [vmem:[%s201 + $0x388] sm:$0xff]
                %318 = vst [vmem:[%s202 + $0x1c8] sm:$0xff] %v317
                %v319 = vld [vmem:[%s201 + $0x3a0] sm:$0xff]
                %320 = vst [vmem:[%s202 + $0x1d0] sm:$0xff] %v319
                %v321 = vld [vmem:[%s201 + $0x3a8] sm:$0xff]
                %322 = vst [vmem:[%s202 + $0x1d8] sm:$0xff] %v321
                %v323 = vld [vmem:[%s201 + $0x3c0] sm:$0xff]
                %324 = vst [vmem:[%s202 + $0x1e0] sm:$0xff] %v323
                %v325 = vld [vmem:[%s201 + $0x3c8] sm:$0xff]
                %326 = vst [vmem:[%s202 + $0x1e8] sm:$0xff] %v325
                %v327 = vld [vmem:[%s201 + $0x3e0] sm:$0xff]
                %328 = vst [vmem:[%s202 + $0x1f0] sm:$0xff] %v327
                %v329 = vld [vmem:[%s201 + $0x3e8] sm:$0xff]
                %330 = vst [vmem:[%s202 + $0x1f8] sm:$0xff] %v329
                %v331 = vld [vmem:[%s201 + $0x400] sm:$0xff]
                %332 = vst [vmem:[%s202 + $0x200] sm:$0xff] %v331
                %v333 = vld [vmem:[%s201 + $0x408] sm:$0xff]
                %334 = vst [vmem:[%s202 + $0x208] sm:$0xff] %v333
                %v335 = vld [vmem:[%s201 + $0x420] sm:$0xff]
                %336 = vst [vmem:[%s202 + $0x210] sm:$0xff] %v335
                %v337 = vld [vmem:[%s201 + $0x428] sm:$0xff]
                %338 = vst [vmem:[%s202 + $0x218] sm:$0xff] %v337
                %v339 = vld [vmem:[%s201 + $0x440] sm:$0xff]
                %340 = vst [vmem:[%s202 + $0x220] sm:$0xff] %v339
                %v341 = vld [vmem:[%s201 + $0x448] sm:$0xff]
                %342 = vst [vmem:[%s202 + $0x228] sm:$0xff] %v341
                %v343 = vld [vmem:[%s201 + $0x460] sm:$0xff]
                %344 = vst [vmem:[%s202 + $0x230] sm:$0xff] %v343
                %v345 = vld [vmem:[%s201 + $0x468] sm:$0xff]
                %346 = vst [vmem:[%s202 + $0x238] sm:$0xff] %v345
                %v347 = vld [vmem:[%s201 + $0x480] sm:$0xff]
                %348 = vst [vmem:[%s202 + $0x240] sm:$0xff] %v347
                %v349 = vld [vmem:[%s201 + $0x488] sm:$0xff]
                %350 = vst [vmem:[%s202 + $0x248] sm:$0xff] %v349
                %v351 = vld [vmem:[%s201 + $0x4a0] sm:$0xff]
                %352 = vst [vmem:[%s202 + $0x250] sm:$0xff] %v351
                %v353 = vld [vmem:[%s201 + $0x4a8] sm:$0xff]
                %354 = vst [vmem:[%s202 + $0x258] sm:$0xff] %v353
                %v355 = vld [vmem:[%s201 + $0x4c0] sm:$0xff]
                %356 = vst [vmem:[%s202 + $0x260] sm:$0xff] %v355
                %v357 = vld [vmem:[%s201 + $0x4c8] sm:$0xff]
                %358 = vst [vmem:[%s202 + $0x268] sm:$0xff] %v357
                %v359 = vld [vmem:[%s201 + $0x4e0] sm:$0xff]
                %360 = vst [vmem:[%s202 + $0x270] sm:$0xff] %v359
                %v361 = vld [vmem:[%s201 + $0x4e8] sm:$0xff]
                %362 = vst [vmem:[%s202 + $0x278] sm:$0xff] %v361
                %v363 = vld [vmem:[%s201 + $0x500] sm:$0xff]
                %364 = vst [vmem:[%s202 + $0x280] sm:$0xff] %v363
                %v365 = vld [vmem:[%s201 + $0x508] sm:$0xff]
                %366 = vst [vmem:[%s202 + $0x288] sm:$0xff] %v365
                %v367 = vld [vmem:[%s201 + $0x520] sm:$0xff]
                %368 = vst [vmem:[%s202 + $0x290] sm:$0xff] %v367
                %v369 = vld [vmem:[%s201 + $0x528] sm:$0xff]
                %370 = vst [vmem:[%s202 + $0x298] sm:$0xff] %v369
                %v371 = vld [vmem:[%s201 + $0x540] sm:$0xff]
                %372 = vst [vmem:[%s202 + $0x2a0] sm:$0xff] %v371
                %v373 = vld [vmem:[%s201 + $0x548] sm:$0xff]
                %374 = vst [vmem:[%s202 + $0x2a8] sm:$0xff] %v373
                %v375 = vld [vmem:[%s201 + $0x560] sm:$0xff]
                %376 = vst [vmem:[%s202 + $0x2b0] sm:$0xff] %v375
                %v377 = vld [vmem:[%s201 + $0x568] sm:$0xff]
                %378 = vst [vmem:[%s202 + $0x2b8] sm:$0xff] %v377
                %v379 = vld [vmem:[%s201 + $0x580] sm:$0xff]
                %380 = vst [vmem:[%s202 + $0x2c0] sm:$0xff] %v379
                %v381 = vld [vmem:[%s201 + $0x588] sm:$0xff]
                %382 = vst [vmem:[%s202 + $0x2c8] sm:$0xff] %v381
                %v383 = vld [vmem:[%s201 + $0x5a0] sm:$0xff]
                %384 = vst [vmem:[%s202 + $0x2d0] sm:$0xff] %v383
                %v385 = vld [vmem:[%s201 + $0x5a8] sm:$0xff]
                %386 = vst [vmem:[%s202 + $0x2d8] sm:$0xff] %v385
                %v387 = vld [vmem:[%s201 + $0x5c0] sm:$0xff]
                %388 = vst [vmem:[%s202 + $0x2e0] sm:$0xff] %v387
                %v389 = vld [vmem:[%s201 + $0x5c8] sm:$0xff]
                %390 = vst [vmem:[%s202 + $0x2e8] sm:$0xff] %v389
                %v391 = vld [vmem:[%s201 + $0x5e0] sm:$0xff]
                %392 = vst [vmem:[%s202 + $0x2f0] sm:$0xff] %v391
                %v393 = vld [vmem:[%s201 + $0x5e8] sm:$0xff]
                %394 = vst [vmem:[%s202 + $0x2f8] sm:$0xff] %v393
                %v395 = vld [vmem:[%s201 + $0x600] sm:$0xff]
                %396 = vst [vmem:[%s202 + $0x300] sm:$0xff] %v395
                %v397 = vld [vmem:[%s201 + $0x608] sm:$0xff]
                %398 = vst [vmem:[%s202 + $0x308] sm:$0xff] %v397
                %v399 = vld [vmem:[%s201 + $0x620] sm:$0xff]
                %400 = vst [vmem:[%s202 + $0x310] sm:$0xff] %v399
                %v401 = vld [vmem:[%s201 + $0x628] sm:$0xff]
                %402 = vst [vmem:[%s202 + $0x318] sm:$0xff] %v401
                %v403 = vld [vmem:[%s201 + $0x640] sm:$0xff]
                %404 = vst [vmem:[%s202 + $0x320] sm:$0xff] %v403
                %v405 = vld [vmem:[%s201 + $0x648] sm:$0xff]
                %406 = vst [vmem:[%s202 + $0x328] sm:$0xff] %v405
                %v407 = vld [vmem:[%s201 + $0x660] sm:$0xff]
                %408 = vst [vmem:[%s202 + $0x330] sm:$0xff] %v407
                %v409 = vld [vmem:[%s201 + $0x668] sm:$0xff]
                %410 = vst [vmem:[%s202 + $0x338] sm:$0xff] %v409
                %v411 = vld [vmem:[%s201 + $0x680] sm:$0xff]
                %412 = vst [vmem:[%s202 + $0x340] sm:$0xff] %v411
                %v413 = vld [vmem:[%s201 + $0x688] sm:$0xff]
                %414 = vst [vmem:[%s202 + $0x348] sm:$0xff] %v413
                %v415 = vld [vmem:[%s201 + $0x6a0] sm:$0xff]
                %416 = vst [vmem:[%s202 + $0x350] sm:$0xff] %v415
                %v417 = vld [vmem:[%s201 + $0x6a8] sm:$0xff]
                %418 = vst [vmem:[%s202 + $0x358] sm:$0xff] %v417
                %v419 = vld [vmem:[%s201 + $0x6c0] sm:$0xff]
                %420 = vst [vmem:[%s202 + $0x360] sm:$0xff] %v419
                %v421 = vld [vmem:[%s201 + $0x6c8] sm:$0xff]
                %422 = vst [vmem:[%s202 + $0x368] sm:$0xff] %v421
                %v423 = vld [vmem:[%s201 + $0x6e0] sm:$0xff]
                %424 = vst [vmem:[%s202 + $0x370] sm:$0xff] %v423
                %v425 = vld [vmem:[%s201 + $0x6e8] sm:$0xff]
                %426 = vst [vmem:[%s202 + $0x378] sm:$0xff] %v425
                %v427 = vld [vmem:[%s201 + $0x700] sm:$0xff]
                %428 = vst [vmem:[%s202 + $0x380] sm:$0xff] %v427
                %v429 = vld [vmem:[%s201 + $0x708] sm:$0xff]
                %430 = vst [vmem:[%s202 + $0x388] sm:$0xff] %v429
                %v431 = vld [vmem:[%s201 + $0x720] sm:$0xff]
                %432 = vst [vmem:[%s202 + $0x390] sm:$0xff] %v431
                %v433 = vld [vmem:[%s201 + $0x728] sm:$0xff]
                %434 = vst [vmem:[%s202 + $0x398] sm:$0xff] %v433
                %v435 = vld [vmem:[%s201 + $0x740] sm:$0xff]
                %436 = vst [vmem:[%s202 + $0x3a0] sm:$0xff] %v435
                %v437 = vld [vmem:[%s201 + $0x748] sm:$0xff]
                %438 = vst [vmem:[%s202 + $0x3a8] sm:$0xff] %v437
                %v439 = vld [vmem:[%s201 + $0x760] sm:$0xff]
                %440 = vst [vmem:[%s202 + $0x3b0] sm:$0xff] %v439
                %v441 = vld [vmem:[%s201 + $0x768] sm:$0xff]
                %442 = vst [vmem:[%s202 + $0x3b8] sm:$0xff] %v441
                %v443 = vld [vmem:[%s201 + $0x780] sm:$0xff]
                %444 = vst [vmem:[%s202 + $0x3c0] sm:$0xff] %v443
                %v445 = vld [vmem:[%s201 + $0x788] sm:$0xff]
                %446 = vst [vmem:[%s202 + $0x3c8] sm:$0xff] %v445
                %v447 = vld [vmem:[%s201 + $0x7a0] sm:$0xff]
                %448 = vst [vmem:[%s202 + $0x3d0] sm:$0xff] %v447
                %v449 = vld [vmem:[%s201 + $0x7a8] sm:$0xff]
                %450 = vst [vmem:[%s202 + $0x3d8] sm:$0xff] %v449
                %v451 = vld [vmem:[%s201 + $0x7c0] sm:$0xff]
                %452 = vst [vmem:[%s202 + $0x3e0] sm:$0xff] %v451
                %v453 = vld [vmem:[%s201 + $0x7c8] sm:$0xff]
                %454 = vst [vmem:[%s202 + $0x3e8] sm:$0xff] %v453
                %v455 = vld [vmem:[%s201 + $0x7e0] sm:$0xff]
                %456 = vst [vmem:[%s202 + $0x3f0] sm:$0xff] %v455
                %v457 = vld [vmem:[%s201 + $0x7e8] sm:$0xff]
                %458 = vst [vmem:[%s202 + $0x3f8] sm:$0xff] %v457
              $region37: #{forward.1} parent=31 // loop_footer
                %s200 = sadd.s32 1, %s196
              $region38: #{forward.1} parent=31 // loop_footer_branch
                %195 = sbr.rel target = $region34
              $region39: #{forward.1} parent=31 // loop_exit
                _
            $region32: #{forward.1} parent=27 // pred_fallthru
              _
            // Predicated region
            $region40: #{forward.1} parent=27 // pred_check
              _
            $region41: #{forward.1} parent=27 // pred_check_branch
              %460 = sbr.rel target = $region43
            $region42: #{forward.1} parent=27 // pred_region
              _
            $region43: #{forward.1} parent=27 // pred_fallthru
              _
          $region28: #{forward.1} parent=23 // pred_fallthru
            _
          %461 = vnop
        $region24: #{forward.1} parent=19 // pred_fallthru
          _
        // Predicated region
        $region44: #{forward.1} parent=19 // pred_check
          %p462 = pneg %p113
        $region45: #{forward.1} parent=19 // pred_check_branch
          %464 = sbr.rel (%p462) target = $region47
        $region46: #{forward.1} parent=19 // pred_region
          %s465 = sld [smem:[#allocation3 + %s29]]
          %s466 = smul.u32 4, %s465
          %p467 = scmp.lt.s32.totalorder %s466, 7
          %s468 = scalar_select %p467, %s466, 7
          %s469 = scalar_lea.vmem %s4, %s468
          %s470 = sld [smem:[#allocation3 + %s29]]
          %s471 = smul.u32 4, %s470
        $region47: #{forward.1} parent=19 // pred_fallthru
          _
      $region20: #{forward.1} parent=5 // pred_fallthru
        _
      %p472 = scmp.le.s32.totalorder 1, %s21
      %p473 = scmp.lt.s32.totalorder %s21, 4
      %p474 = pnand %p472, %p473
      %p475 = pneg %p474
      // Predicated region
      $region48: #{forward.1} parent=5 // pred_check
        _
      $region49: #{forward.1} parent=5 // pred_check_branch
        %477 = sbr.rel (%p474) target = $region51
      $region50: #{forward.1} parent=5 // pred_region
        %s478 = ssub.s32 %s21, 1
        %s479 = sand.u32 %s78, 1
        %s480 = sand.u32 %s78, 1
        %s481 = smul.addr %s480, 1024
        %s482 = scalar_lea.vmem [#allocation5], %s481
        // Predicated region
        $region52: #{forward.1} parent=50 // pred_check
          %p483 = pneg %p91
        $region53: #{forward.1} parent=50 // pred_check_branch
          %485 = sbr.rel (%p483) target = $region55
        $region54: #{forward.1} parent=50 // pred_region
          _
        $region55: #{forward.1} parent=50 // pred_fallthru
          _
        %p486 = scmp.lt.s32.totalorder %s30, 0
        %s487 = scalar_select %p486, %s30, 0
        %s488 = smul.addr %s487, 4
        %s489 = smul.addr %s488, 4
        %s490 = scalar_lea.vmem %s2, %s489
        %p491 = pneg %p59
        %p492 = pneg %p56
        %s493 = sand.u32 %s78, 1
        %s494 = sand.u32 %s78, 1
        %s495 = smul.addr %s494, 1024
        %s496 = scalar_lea.vmem [#allocation5], %s495
        %p497 = pneg %p91
        %p498 = pneg %p88
        %s499 = sld [smem:[#allocation3 + %s31]]
        %s500 = smul.u32 4, %s499
        %p501 = scmp.lt.s32.totalorder %s500, 7
        %s502 = scalar_select %p501, %s500, 7
        %s503 = scalar_lea.vmem %s4, %s502
        %p504 = pneg %p119
        %p505 = pneg %p116
        %p506 = pneg %p149
        %p507 = pneg %p146
        %s508 = sld [smem:[#allocation3 + %s31]]
        %s509 = smul.u32 4, %s508
        %p510 = scmp.lt.s32.totalorder %s30, 0
        %s511 = scalar_select %p510, %s30, 0
        %p512 = scmp.lt.s32.totalorder %s509, 7
        %s513 = scalar_select %p512, %s509, 7
        %s514 = smul.addr %s511, 8
        %s515 = sadd.s32 %s513, %s514
        %s516 = smul.addr %s515, 8
        %s517 = scalar_lea.vmem %s5, %s516
        %p518 = scmp.lt.s32.totalorder %s30, 0
        %s519 = scalar_select %p518, %s30, 0
        %s520 = smul.addr %s519, 4
        %s521 = smul.addr %s520, 4
        %s522 = scalar_lea.vmem %s2, %s521
        %s523 = sld [smem:[#allocation4 + %s31]]
        %s524 = sld [smem:[#allocation3 + %s31]]
        %s525 = smul.u32 64, %s523
        %s526 = smul.u32 4, %s524
        %s527 = sld [smem:[#allocation3 + %s31]]
        %s528 = smul.u32 4, %s527
        %p529 = scmp.lt.s32.totalorder %s528, 7
        %s530 = scalar_select %p529, %s528, 7
        %s531 = scalar_lea.vmem %s4, %s530
        %s532 = sld [smem:[#allocation3 + %s31]]
        %s533 = smul.u32 4, %s532
        %s534 = sld [smem:[#allocation3 + %s31]]
        %s535 = smul.u32 4, %s534
        %p536 = scmp.lt.s32.totalorder %s30, 0
        %s537 = scalar_select %p536, %s30, 0
        %p538 = scmp.lt.s32.totalorder %s535, 7
        %s539 = scalar_select %p538, %s535, 7
        %s540 = smul.addr %s537, 8
        %s541 = sadd.s32 %s539, %s540
        %s542 = smul.addr %s541, 8
        %s543 = scalar_lea.vmem %s5, %s542
        %s544 = sld [smem:[#allocation3 + %s31]]
        %s545 = smul.u32 4, %s544
        %s546 = sld [smem:[#allocation4 + %s31]]
        %p547 = scmp.eq.s32.totalorder %s546, 0
        // Predicated region
        $region56: #{forward.1} parent=50 // pred_check
          %p548 = pneg %p547
        $region57: #{forward.1} parent=50 // pred_check_branch
          %550 = sbr.rel (%p548) target = $region59
        $region58: #{forward.1} parent=50 // pred_region
          %v551 = vld [vmem:[%s531] sm:$0xf]
          %v553 = vlaneseq
          %v554 = vshrl.u32 %v553, 7
          %v555 = vsub.s32 0, %v554
          %v556 = vrot.slane %v551, %v555
          %v557 = vlaneseq
          %v558 = vshrl.u32 %v557, 7
          %v559 = vsub.s32 1, %v558
          %v560 = vrot.slane %v551, %v559
          %v561 = vlaneseq
          %v562 = vshrl.u32 %v561, 7
          %v563 = vsub.s32 2, %v562
          %v564 = vrot.slane %v551, %v563
          %v565 = vlaneseq
          %v566 = vshrl.u32 %v565, 7
          %v567 = vsub.s32 3, %v566
          %v568 = vrot.slane %v551, %v567
          %573 = vst [vmem:[%s543] sm:$0xff] %v556
          %574 = vst [vmem:[%s543 + $0x8] sm:$0xff] %v560
          %575 = vst [vmem:[%s543 + $0x10] sm:$0xff] %v564
          %576 = vst [vmem:[%s543 + $0x18] sm:$0xff] %v568
        $region59: #{forward.1} parent=50 // pred_fallthru
          _
        %v577 = vld [vmem:[%s543] sm:$0xff]
        %v578 = vld [vmem:[%s543 + $0x8] sm:$0xff]
        %v579 = vld [vmem:[%s543 + $0x10] sm:$0xff]
        %v580 = vld [vmem:[%s543 + $0x18] sm:$0xff]
        %s581 = smul.u32 %s546, 4
        %s582 = smul.addr %s581, 4
        %s583 = scalar_lea.vmem %s522, %s582
        %v584 = vld [vmem:[%s583] sm:$0xff]
        %v585 = vld [vmem:[%s583 + $0x8] sm:$0xff]
        %v586 = vld [vmem:[%s482] sm:$0xff]
        %v587 = vld [vmem:[%s482 + $0x8] sm:$0xff]
        %v588 = vld [vmem:[%s482 + $0x10] sm:$0xff]
        %v589 = vld [vmem:[%s482 + $0x18] sm:$0xff]
        %v590 = vld [vmem:[%s482 + $0x20] sm:$0xff]
        %v591 = vld [vmem:[%s482 + $0x28] sm:$0xff]
        %v592 = vld [vmem:[%s482 + $0x30] sm:$0xff]
        %v593 = vld [vmem:[%s482 + $0x38] sm:$0xff]
        %v594 = vld [vmem:[%s482 + $0x40] sm:$0xff]
        %v595 = vld [vmem:[%s482 + $0x48] sm:$0xff]
        %v596 = vld [vmem:[%s482 + $0x50] sm:$0xff]
        %v597 = vld [vmem:[%s482 + $0x58] sm:$0xff]
        %v598 = vld [vmem:[%s482 + $0x60] sm:$0xff]
        %v599 = vld [vmem:[%s482 + $0x68] sm:$0xff]
        %v600 = vld [vmem:[%s482 + $0x70] sm:$0xff]
        %v601 = vld [vmem:[%s482 + $0x78] sm:$0xff]
        %v602 = vld [vmem:[%s482 + $0x80] sm:$0xff]
        %v603 = vld [vmem:[%s482 + $0x88] sm:$0xff]
        %v604 = vld [vmem:[%s482 + $0x90] sm:$0xff]
        %v605 = vld [vmem:[%s482 + $0x98] sm:$0xff]
        %v606 = vld [vmem:[%s482 + $0xa0] sm:$0xff]
        %v607 = vld [vmem:[%s482 + $0xa8] sm:$0xff]
        %v608 = vld [vmem:[%s482 + $0xb0] sm:$0xff]
        %v609 = vld [vmem:[%s482 + $0xb8] sm:$0xff]
        %v610 = vld [vmem:[%s482 + $0xc0] sm:$0xff]
        %v611 = vld [vmem:[%s482 + $0xc8] sm:$0xff]
        %v612 = vld [vmem:[%s482 + $0xd0] sm:$0xff]
        %v613 = vld [vmem:[%s482 + $0xd8] sm:$0xff]
        %v614 = vld [vmem:[%s482 + $0xe0] sm:$0xff]
        %v615 = vld [vmem:[%s482 + $0xe8] sm:$0xff]
        %v616 = vld [vmem:[%s482 + $0xf0] sm:$0xff]
        %v617 = vld [vmem:[%s482 + $0xf8] sm:$0xff]
        %v618 = vld [vmem:[%s482 + $0x100] sm:$0xff]
        %v619 = vld [vmem:[%s482 + $0x108] sm:$0xff]
        %v620 = vld [vmem:[%s482 + $0x110] sm:$0xff]
        %v621 = vld [vmem:[%s482 + $0x118] sm:$0xff]
        %v622 = vld [vmem:[%s482 + $0x120] sm:$0xff]
        %v623 = vld [vmem:[%s482 + $0x128] sm:$0xff]
        %v624 = vld [vmem:[%s482 + $0x130] sm:$0xff]
        %v625 = vld [vmem:[%s482 + $0x138] sm:$0xff]
        %v626 = vld [vmem:[%s482 + $0x140] sm:$0xff]
        %v627 = vld [vmem:[%s482 + $0x148] sm:$0xff]
        %v628 = vld [vmem:[%s482 + $0x150] sm:$0xff]
        %v629 = vld [vmem:[%s482 + $0x158] sm:$0xff]
        %v630 = vld [vmem:[%s482 + $0x160] sm:$0xff]
        %v631 = vld [vmem:[%s482 + $0x168] sm:$0xff]
        %v632 = vld [vmem:[%s482 + $0x170] sm:$0xff]
        %v633 = vld [vmem:[%s482 + $0x178] sm:$0xff]
        %v634 = vld [vmem:[%s482 + $0x180] sm:$0xff]
        %v635 = vld [vmem:[%s482 + $0x188] sm:$0xff]
        %v636 = vld [vmem:[%s482 + $0x190] sm:$0xff]
        %v637 = vld [vmem:[%s482 + $0x198] sm:$0xff]
        %v638 = vld [vmem:[%s482 + $0x1a0] sm:$0xff]
        %v639 = vld [vmem:[%s482 + $0x1a8] sm:$0xff]
        %v640 = vld [vmem:[%s482 + $0x1b0] sm:$0xff]
        %v641 = vld [vmem:[%s482 + $0x1b8] sm:$0xff]
        %v642 = vld [vmem:[%s482 + $0x1c0] sm:$0xff]
        %v643 = vld [vmem:[%s482 + $0x1c8] sm:$0xff]
        %v644 = vld [vmem:[%s482 + $0x1d0] sm:$0xff]
        %v645 = vld [vmem:[%s482 + $0x1d8] sm:$0xff]
        %v646 = vld [vmem:[%s482 + $0x1e0] sm:$0xff]
        %v647 = vld [vmem:[%s482 + $0x1e8] sm:$0xff]
        %v648 = vld [vmem:[%s482 + $0x1f0] sm:$0xff]
        %v649 = vld [vmem:[%s482 + $0x1f8] sm:$0xff]
        %v650 = vld [vmem:[%s482 + $0x200] sm:$0xff]
        %v651 = vld [vmem:[%s482 + $0x208] sm:$0xff]
        %v652 = vld [vmem:[%s482 + $0x210] sm:$0xff]
        %v653 = vld [vmem:[%s482 + $0x218] sm:$0xff]
        %v654 = vld [vmem:[%s482 + $0x220] sm:$0xff]
        %v655 = vld [vmem:[%s482 + $0x228] sm:$0xff]
        %v656 = vld [vmem:[%s482 + $0x230] sm:$0xff]
        %v657 = vld [vmem:[%s482 + $0x238] sm:$0xff]
        %v658 = vld [vmem:[%s482 + $0x240] sm:$0xff]
        %v659 = vld [vmem:[%s482 + $0x248] sm:$0xff]
        %v660 = vld [vmem:[%s482 + $0x250] sm:$0xff]
        %v661 = vld [vmem:[%s482 + $0x258] sm:$0xff]
        %v662 = vld [vmem:[%s482 + $0x260] sm:$0xff]
        %v663 = vld [vmem:[%s482 + $0x268] sm:$0xff]
        %v664 = vld [vmem:[%s482 + $0x270] sm:$0xff]
        %v665 = vld [vmem:[%s482 + $0x278] sm:$0xff]
        %v666 = vld [vmem:[%s482 + $0x280] sm:$0xff]
        %v667 = vld [vmem:[%s482 + $0x288] sm:$0xff]
        %v668 = vld [vmem:[%s482 + $0x290] sm:$0xff]
        %v669 = vld [vmem:[%s482 + $0x298] sm:$0xff]
        %v670 = vld [vmem:[%s482 + $0x2a0] sm:$0xff]
        %v671 = vld [vmem:[%s482 + $0x2a8] sm:$0xff]
        %v672 = vld [vmem:[%s482 + $0x2b0] sm:$0xff]
        %v673 = vld [vmem:[%s482 + $0x2b8] sm:$0xff]
        %v674 = vld [vmem:[%s482 + $0x2c0] sm:$0xff]
        %v675 = vld [vmem:[%s482 + $0x2c8] sm:$0xff]
        %v676 = vld [vmem:[%s482 + $0x2d0] sm:$0xff]
        %v677 = vld [vmem:[%s482 + $0x2d8] sm:$0xff]
        %v678 = vld [vmem:[%s482 + $0x2e0] sm:$0xff]
        %v679 = vld [vmem:[%s482 + $0x2e8] sm:$0xff]
        %v680 = vld [vmem:[%s482 + $0x2f0] sm:$0xff]
        %v681 = vld [vmem:[%s482 + $0x2f8] sm:$0xff]
        %v682 = vld [vmem:[%s482 + $0x300] sm:$0xff]
        %v683 = vld [vmem:[%s482 + $0x308] sm:$0xff]
        %v684 = vld [vmem:[%s482 + $0x310] sm:$0xff]
        %v685 = vld [vmem:[%s482 + $0x318] sm:$0xff]
        %v686 = vld [vmem:[%s482 + $0x320] sm:$0xff]
        %v687 = vld [vmem:[%s482 + $0x328] sm:$0xff]
        %v688 = vld [vmem:[%s482 + $0x330] sm:$0xff]
        %v689 = vld [vmem:[%s482 + $0x338] sm:$0xff]
        %v690 = vld [vmem:[%s482 + $0x340] sm:$0xff]
        %v691 = vld [vmem:[%s482 + $0x348] sm:$0xff]
        %v692 = vld [vmem:[%s482 + $0x350] sm:$0xff]
        %v693 = vld [vmem:[%s482 + $0x358] sm:$0xff]
        %v694 = vld [vmem:[%s482 + $0x360] sm:$0xff]
        %v695 = vld [vmem:[%s482 + $0x368] sm:$0xff]
        %v696 = vld [vmem:[%s482 + $0x370] sm:$0xff]
        %v697 = vld [vmem:[%s482 + $0x378] sm:$0xff]
        %v698 = vld [vmem:[%s482 + $0x380] sm:$0xff]
        %v699 = vld [vmem:[%s482 + $0x388] sm:$0xff]
        %v700 = vld [vmem:[%s482 + $0x390] sm:$0xff]
        %v701 = vld [vmem:[%s482 + $0x398] sm:$0xff]
        %v702 = vld [vmem:[%s482 + $0x3a0] sm:$0xff]
        %v703 = vld [vmem:[%s482 + $0x3a8] sm:$0xff]
        %v704 = vld [vmem:[%s482 + $0x3b0] sm:$0xff]
        %v705 = vld [vmem:[%s482 + $0x3b8] sm:$0xff]
        %v706 = vld [vmem:[%s482 + $0x3c0] sm:$0xff]
        %v707 = vld [vmem:[%s482 + $0x3c8] sm:$0xff]
        %v708 = vld [vmem:[%s482 + $0x3d0] sm:$0xff]
        %v709 = vld [vmem:[%s482 + $0x3d8] sm:$0xff]
        %v710 = vld [vmem:[%s482 + $0x3e0] sm:$0xff]
        %v711 = vld [vmem:[%s482 + $0x3e8] sm:$0xff]
        %v712 = vld [vmem:[%s482 + $0x3f0] sm:$0xff]
        %v713 = vld [vmem:[%s482 + $0x3f8] sm:$0xff]
        %v716 = vunpack.c.l.b16 %v584
        %v717 = vunpack.c.h.b16 %v584
        %v718 = vunpack.c.l.b16 %v585
        %v719 = vunpack.c.h.b16 %v585
        %v720 = vpack.c.b16 %v716, %v716
        %v721 = vpack.c.b16 %v717, %v717
        %v722 = vpack.c.b16 %v718, %v718
        %v723 = vpack.c.b16 %v719, %v719
        %v856 = vunpack.c.l.b16 %v586
        %v857 = vunpack.c.h.b16 %v586
        %v858 = vunpack.c.l.b16 %v587
        %v859 = vunpack.c.h.b16 %v587
        %v860 = vunpack.c.l.b16 %v588
        %v861 = vunpack.c.h.b16 %v588
        %v862 = vunpack.c.l.b16 %v589
        %v863 = vunpack.c.h.b16 %v589
        %v864 = vunpack.c.l.b16 %v590
        %v865 = vunpack.c.h.b16 %v590
        %v866 = vunpack.c.l.b16 %v591
        %v867 = vunpack.c.h.b16 %v591
        %v868 = vunpack.c.l.b16 %v592
        %v869 = vunpack.c.h.b16 %v592
        %v870 = vunpack.c.l.b16 %v593
        %v871 = vunpack.c.h.b16 %v593
        %v872 = vunpack.c.l.b16 %v594
        %v873 = vunpack.c.h.b16 %v594
        %v874 = vunpack.c.l.b16 %v595
        %v875 = vunpack.c.h.b16 %v595
        %v876 = vunpack.c.l.b16 %v596
        %v877 = vunpack.c.h.b16 %v596
        %v878 = vunpack.c.l.b16 %v597
        %v879 = vunpack.c.h.b16 %v597
        %v880 = vunpack.c.l.b16 %v598
        %v881 = vunpack.c.h.b16 %v598
        %v882 = vunpack.c.l.b16 %v599
        %v883 = vunpack.c.h.b16 %v599
        %v884 = vunpack.c.l.b16 %v600
        %v885 = vunpack.c.h.b16 %v600
        %v886 = vunpack.c.l.b16 %v601
        %v887 = vunpack.c.h.b16 %v601
        %v888 = vunpack.c.l.b16 %v602
        %v889 = vunpack.c.h.b16 %v602
        %v890 = vunpack.c.l.b16 %v603
        %v891 = vunpack.c.h.b16 %v603
        %v892 = vunpack.c.l.b16 %v604
        %v893 = vunpack.c.h.b16 %v604
        %v894 = vunpack.c.l.b16 %v605
        %v895 = vunpack.c.h.b16 %v605
        %v896 = vunpack.c.l.b16 %v606
        %v897 = vunpack.c.h.b16 %v606
        %v898 = vunpack.c.l.b16 %v607
        %v899 = vunpack.c.h.b16 %v607
        %v900 = vunpack.c.l.b16 %v608
        %v901 = vunpack.c.h.b16 %v608
        %v902 = vunpack.c.l.b16 %v609
        %v903 = vunpack.c.h.b16 %v609
        %v904 = vunpack.c.l.b16 %v610
        %v905 = vunpack.c.h.b16 %v610
        %v906 = vunpack.c.l.b16 %v611
        %v907 = vunpack.c.h.b16 %v611
        %v908 = vunpack.c.l.b16 %v612
        %v909 = vunpack.c.h.b16 %v612
        %v910 = vunpack.c.l.b16 %v613
        %v911 = vunpack.c.h.b16 %v613
        %v912 = vunpack.c.l.b16 %v614
        %v913 = vunpack.c.h.b16 %v614
        %v914 = vunpack.c.l.b16 %v615
        %v915 = vunpack.c.h.b16 %v615
        %v916 = vunpack.c.l.b16 %v616
        %v917 = vunpack.c.h.b16 %v616
        %v918 = vunpack.c.l.b16 %v617
        %v919 = vunpack.c.h.b16 %v617
        %v920 = vunpack.c.l.b16 %v618
        %v921 = vunpack.c.h.b16 %v618
        %v922 = vunpack.c.l.b16 %v619
        %v923 = vunpack.c.h.b16 %v619
        %v924 = vunpack.c.l.b16 %v620
        %v925 = vunpack.c.h.b16 %v620
        %v926 = vunpack.c.l.b16 %v621
        %v927 = vunpack.c.h.b16 %v621
        %v928 = vunpack.c.l.b16 %v622
        %v929 = vunpack.c.h.b16 %v622
        %v930 = vunpack.c.l.b16 %v623
        %v931 = vunpack.c.h.b16 %v623
        %v932 = vunpack.c.l.b16 %v624
        %v933 = vunpack.c.h.b16 %v624
        %v934 = vunpack.c.l.b16 %v625
        %v935 = vunpack.c.h.b16 %v625
        %v936 = vunpack.c.l.b16 %v626
        %v937 = vunpack.c.h.b16 %v626
        %v938 = vunpack.c.l.b16 %v627
        %v939 = vunpack.c.h.b16 %v627
        %v940 = vunpack.c.l.b16 %v628
        %v941 = vunpack.c.h.b16 %v628
        %v942 = vunpack.c.l.b16 %v629
        %v943 = vunpack.c.h.b16 %v629
        %v944 = vunpack.c.l.b16 %v630
        %v945 = vunpack.c.h.b16 %v630
        %v946 = vunpack.c.l.b16 %v631
        %v947 = vunpack.c.h.b16 %v631
        %v948 = vunpack.c.l.b16 %v632
        %v949 = vunpack.c.h.b16 %v632
        %v950 = vunpack.c.l.b16 %v633
        %v951 = vunpack.c.h.b16 %v633
        %v952 = vunpack.c.l.b16 %v634
        %v953 = vunpack.c.h.b16 %v634
        %v954 = vunpack.c.l.b16 %v635
        %v955 = vunpack.c.h.b16 %v635
        %v956 = vunpack.c.l.b16 %v636
        %v957 = vunpack.c.h.b16 %v636
        %v958 = vunpack.c.l.b16 %v637
        %v959 = vunpack.c.h.b16 %v637
        %v960 = vunpack.c.l.b16 %v638
        %v961 = vunpack.c.h.b16 %v638
        %v962 = vunpack.c.l.b16 %v639
        %v963 = vunpack.c.h.b16 %v639
        %v964 = vunpack.c.l.b16 %v640
        %v965 = vunpack.c.h.b16 %v640
        %v966 = vunpack.c.l.b16 %v641
        %v967 = vunpack.c.h.b16 %v641
        %v968 = vunpack.c.l.b16 %v642
        %v969 = vunpack.c.h.b16 %v642
        %v970 = vunpack.c.l.b16 %v643
        %v971 = vunpack.c.h.b16 %v643
        %v972 = vunpack.c.l.b16 %v644
        %v973 = vunpack.c.h.b16 %v644
        %v974 = vunpack.c.l.b16 %v645
        %v975 = vunpack.c.h.b16 %v645
        %v976 = vunpack.c.l.b16 %v646
        %v977 = vunpack.c.h.b16 %v646
        %v978 = vunpack.c.l.b16 %v647
        %v979 = vunpack.c.h.b16 %v647
        %v980 = vunpack.c.l.b16 %v648
        %v981 = vunpack.c.h.b16 %v648
        %v982 = vunpack.c.l.b16 %v649
        %v983 = vunpack.c.h.b16 %v649
        %v984 = vunpack.c.l.b16 %v650
        %v985 = vunpack.c.h.b16 %v650
        %v986 = vunpack.c.l.b16 %v651
        %v987 = vunpack.c.h.b16 %v651
        %v988 = vunpack.c.l.b16 %v652
        %v989 = vunpack.c.h.b16 %v652
        %v990 = vunpack.c.l.b16 %v653
        %v991 = vunpack.c.h.b16 %v653
        %v992 = vunpack.c.l.b16 %v654
        %v993 = vunpack.c.h.b16 %v654
        %v994 = vunpack.c.l.b16 %v655
        %v995 = vunpack.c.h.b16 %v655
        %v996 = vunpack.c.l.b16 %v656
        %v997 = vunpack.c.h.b16 %v656
        %v998 = vunpack.c.l.b16 %v657
        %v999 = vunpack.c.h.b16 %v657
        %v1000 = vunpack.c.l.b16 %v658
        %v1001 = vunpack.c.h.b16 %v658
        %v1002 = vunpack.c.l.b16 %v659
        %v1003 = vunpack.c.h.b16 %v659
        %v1004 = vunpack.c.l.b16 %v660
        %v1005 = vunpack.c.h.b16 %v660
        %v1006 = vunpack.c.l.b16 %v661
        %v1007 = vunpack.c.h.b16 %v661
        %v1008 = vunpack.c.l.b16 %v662
        %v1009 = vunpack.c.h.b16 %v662
        %v1010 = vunpack.c.l.b16 %v663
        %v1011 = vunpack.c.h.b16 %v663
        %v1012 = vunpack.c.l.b16 %v664
        %v1013 = vunpack.c.h.b16 %v664
        %v1014 = vunpack.c.l.b16 %v665
        %v1015 = vunpack.c.h.b16 %v665
        %v1016 = vunpack.c.l.b16 %v666
        %v1017 = vunpack.c.h.b16 %v666
        %v1018 = vunpack.c.l.b16 %v667
        %v1019 = vunpack.c.h.b16 %v667
        %v1020 = vunpack.c.l.b16 %v668
        %v1021 = vunpack.c.h.b16 %v668
        %v1022 = vunpack.c.l.b16 %v669
        %v1023 = vunpack.c.h.b16 %v669
        %v1024 = vunpack.c.l.b16 %v670
        %v1025 = vunpack.c.h.b16 %v670
        %v1026 = vunpack.c.l.b16 %v671
        %v1027 = vunpack.c.h.b16 %v671
        %v1028 = vunpack.c.l.b16 %v672
        %v1029 = vunpack.c.h.b16 %v672
        %v1030 = vunpack.c.l.b16 %v673
        %v1031 = vunpack.c.h.b16 %v673
        %v1032 = vunpack.c.l.b16 %v674
        %v1033 = vunpack.c.h.b16 %v674
        %v1034 = vunpack.c.l.b16 %v675
        %v1035 = vunpack.c.h.b16 %v675
        %v1036 = vunpack.c.l.b16 %v676
        %v1037 = vunpack.c.h.b16 %v676
        %v1038 = vunpack.c.l.b16 %v677
        %v1039 = vunpack.c.h.b16 %v677
        %v1040 = vunpack.c.l.b16 %v678
        %v1041 = vunpack.c.h.b16 %v678
        %v1042 = vunpack.c.l.b16 %v679
        %v1043 = vunpack.c.h.b16 %v679
        %v1044 = vunpack.c.l.b16 %v680
        %v1045 = vunpack.c.h.b16 %v680
        %v1046 = vunpack.c.l.b16 %v681
        %v1047 = vunpack.c.h.b16 %v681
        %v1048 = vunpack.c.l.b16 %v682
        %v1049 = vunpack.c.h.b16 %v682
        %v1050 = vunpack.c.l.b16 %v683
        %v1051 = vunpack.c.h.b16 %v683
        %v1052 = vunpack.c.l.b16 %v684
        %v1053 = vunpack.c.h.b16 %v684
        %v1054 = vunpack.c.l.b16 %v685
        %v1055 = vunpack.c.h.b16 %v685
        %v1056 = vunpack.c.l.b16 %v686
        %v1057 = vunpack.c.h.b16 %v686
        %v1058 = vunpack.c.l.b16 %v687
        %v1059 = vunpack.c.h.b16 %v687
        %v1060 = vunpack.c.l.b16 %v688
        %v1061 = vunpack.c.h.b16 %v688
        %v1062 = vunpack.c.l.b16 %v689
        %v1063 = vunpack.c.h.b16 %v689
        %v1064 = vunpack.c.l.b16 %v690
        %v1065 = vunpack.c.h.b16 %v690
        %v1066 = vunpack.c.l.b16 %v691
        %v1067 = vunpack.c.h.b16 %v691
        %v1068 = vunpack.c.l.b16 %v692
        %v1069 = vunpack.c.h.b16 %v692
        %v1070 = vunpack.c.l.b16 %v693
        %v1071 = vunpack.c.h.b16 %v693
        %v1072 = vunpack.c.l.b16 %v694
        %v1073 = vunpack.c.h.b16 %v694
        %v1074 = vunpack.c.l.b16 %v695
        %v1075 = vunpack.c.h.b16 %v695
        %v1076 = vunpack.c.l.b16 %v696
        %v1077 = vunpack.c.h.b16 %v696
        %v1078 = vunpack.c.l.b16 %v697
        %v1079 = vunpack.c.h.b16 %v697
        %v1080 = vunpack.c.l.b16 %v698
        %v1081 = vunpack.c.h.b16 %v698
        %v1082 = vunpack.c.l.b16 %v699
        %v1083 = vunpack.c.h.b16 %v699
        %v1084 = vunpack.c.l.b16 %v700
        %v1085 = vunpack.c.h.b16 %v700
        %v1086 = vunpack.c.l.b16 %v701
        %v1087 = vunpack.c.h.b16 %v701
        %v1088 = vunpack.c.l.b16 %v702
        %v1089 = vunpack.c.h.b16 %v702
        %v1090 = vunpack.c.l.b16 %v703
        %v1091 = vunpack.c.h.b16 %v703
        %v1092 = vunpack.c.l.b16 %v704
        %v1093 = vunpack.c.h.b16 %v704
        %v1094 = vunpack.c.l.b16 %v705
        %v1095 = vunpack.c.h.b16 %v705
        %v1096 = vunpack.c.l.b16 %v706
        %v1097 = vunpack.c.h.b16 %v706
        %v1098 = vunpack.c.l.b16 %v707
        %v1099 = vunpack.c.h.b16 %v707
        %v1100 = vunpack.c.l.b16 %v708
        %v1101 = vunpack.c.h.b16 %v708
        %v1102 = vunpack.c.l.b16 %v709
        %v1103 = vunpack.c.h.b16 %v709
        %v1104 = vunpack.c.l.b16 %v710
        %v1105 = vunpack.c.h.b16 %v710
        %v1106 = vunpack.c.l.b16 %v711
        %v1107 = vunpack.c.h.b16 %v711
        %v1108 = vunpack.c.l.b16 %v712
        %v1109 = vunpack.c.h.b16 %v712
        %v1110 = vunpack.c.l.b16 %v713
        %v1111 = vunpack.c.h.b16 %v713
        %v1112 = vpack.c.b16 %v860, %v856
        %v1113 = vpack.c.b16 %v861, %v857
        %v1114 = vpack.c.b16 %v862, %v858
        %v1115 = vpack.c.b16 %v863, %v859
        %v1116 = vpack.c.b16 %v868, %v864
        %v1117 = vpack.c.b16 %v869, %v865
        %v1118 = vpack.c.b16 %v870, %v866
        %v1119 = vpack.c.b16 %v871, %v867
        %v1120 = vpack.c.b16 %v876, %v872
        %v1121 = vpack.c.b16 %v877, %v873
        %v1122 = vpack.c.b16 %v878, %v874
        %v1123 = vpack.c.b16 %v879, %v875
        %v1124 = vpack.c.b16 %v884, %v880
        %v1125 = vpack.c.b16 %v885, %v881
        %v1126 = vpack.c.b16 %v886, %v882
        %v1127 = vpack.c.b16 %v887, %v883
        %v1128 = vpack.c.b16 %v892, %v888
        %v1129 = vpack.c.b16 %v893, %v889
        %v1130 = vpack.c.b16 %v894, %v890
        %v1131 = vpack.c.b16 %v895, %v891
        %v1132 = vpack.c.b16 %v900, %v896
        %v1133 = vpack.c.b16 %v901, %v897
        %v1134 = vpack.c.b16 %v902, %v898
        %v1135 = vpack.c.b16 %v903, %v899
        %v1136 = vpack.c.b16 %v908, %v904
        %v1137 = vpack.c.b16 %v909, %v905
        %v1138 = vpack.c.b16 %v910, %v906
        %v1139 = vpack.c.b16 %v911, %v907
        %v1140 = vpack.c.b16 %v916, %v912
        %v1141 = vpack.c.b16 %v917, %v913
        %v1142 = vpack.c.b16 %v918, %v914
        %v1143 = vpack.c.b16 %v919, %v915
        %v1144 = vpack.c.b16 %v924, %v920
        %v1145 = vpack.c.b16 %v925, %v921
        %v1146 = vpack.c.b16 %v926, %v922
        %v1147 = vpack.c.b16 %v927, %v923
        %v1148 = vpack.c.b16 %v932, %v928
        %v1149 = vpack.c.b16 %v933, %v929
        %v1150 = vpack.c.b16 %v934, %v930
        %v1151 = vpack.c.b16 %v935, %v931
        %v1152 = vpack.c.b16 %v940, %v936
        %v1153 = vpack.c.b16 %v941, %v937
        %v1154 = vpack.c.b16 %v942, %v938
        %v1155 = vpack.c.b16 %v943, %v939
        %v1156 = vpack.c.b16 %v948, %v944
        %v1157 = vpack.c.b16 %v949, %v945
        %v1158 = vpack.c.b16 %v950, %v946
        %v1159 = vpack.c.b16 %v951, %v947
        %v1160 = vpack.c.b16 %v956, %v952
        %v1161 = vpack.c.b16 %v957, %v953
        %v1162 = vpack.c.b16 %v958, %v954
        %v1163 = vpack.c.b16 %v959, %v955
        %v1164 = vpack.c.b16 %v964, %v960
        %v1165 = vpack.c.b16 %v965, %v961
        %v1166 = vpack.c.b16 %v966, %v962
        %v1167 = vpack.c.b16 %v967, %v963
        %v1168 = vpack.c.b16 %v972, %v968
        %v1169 = vpack.c.b16 %v973, %v969
        %v1170 = vpack.c.b16 %v974, %v970
        %v1171 = vpack.c.b16 %v975, %v971
        %v1172 = vpack.c.b16 %v980, %v976
        %v1173 = vpack.c.b16 %v981, %v977
        %v1174 = vpack.c.b16 %v982, %v978
        %v1175 = vpack.c.b16 %v983, %v979
        %v1176 = vpack.c.b16 %v988, %v984
        %v1177 = vpack.c.b16 %v989, %v985
        %v1178 = vpack.c.b16 %v990, %v986
        %v1179 = vpack.c.b16 %v991, %v987
        %v1180 = vpack.c.b16 %v996, %v992
        %v1181 = vpack.c.b16 %v997, %v993
        %v1182 = vpack.c.b16 %v998, %v994
        %v1183 = vpack.c.b16 %v999, %v995
        %v1184 = vpack.c.b16 %v1004, %v1000
        %v1185 = vpack.c.b16 %v1005, %v1001
        %v1186 = vpack.c.b16 %v1006, %v1002
        %v1187 = vpack.c.b16 %v1007, %v1003
        %v1188 = vpack.c.b16 %v1012, %v1008
        %v1189 = vpack.c.b16 %v1013, %v1009
        %v1190 = vpack.c.b16 %v1014, %v1010
        %v1191 = vpack.c.b16 %v1015, %v1011
        %v1192 = vpack.c.b16 %v1020, %v1016
        %v1193 = vpack.c.b16 %v1021, %v1017
        %v1194 = vpack.c.b16 %v1022, %v1018
        %v1195 = vpack.c.b16 %v1023, %v1019
        %v1196 = vpack.c.b16 %v1028, %v1024
        %v1197 = vpack.c.b16 %v1029, %v1025
        %v1198 = vpack.c.b16 %v1030, %v1026
        %v1199 = vpack.c.b16 %v1031, %v1027
        %v1200 = vpack.c.b16 %v1036, %v1032
        %v1201 = vpack.c.b16 %v1037, %v1033
        %v1202 = vpack.c.b16 %v1038, %v1034
        %v1203 = vpack.c.b16 %v1039, %v1035
        %v1204 = vpack.c.b16 %v1044, %v1040
        %v1205 = vpack.c.b16 %v1045, %v1041
        %v1206 = vpack.c.b16 %v1046, %v1042
        %v1207 = vpack.c.b16 %v1047, %v1043
        %v1208 = vpack.c.b16 %v1052, %v1048
        %v1209 = vpack.c.b16 %v1053, %v1049
        %v1210 = vpack.c.b16 %v1054, %v1050
        %v1211 = vpack.c.b16 %v1055, %v1051
        %v1212 = vpack.c.b16 %v1060, %v1056
        %v1213 = vpack.c.b16 %v1061, %v1057
        %v1214 = vpack.c.b16 %v1062, %v1058
        %v1215 = vpack.c.b16 %v1063, %v1059
        %v1216 = vpack.c.b16 %v1068, %v1064
        %v1217 = vpack.c.b16 %v1069, %v1065
        %v1218 = vpack.c.b16 %v1070, %v1066
        %v1219 = vpack.c.b16 %v1071, %v1067
        %v1220 = vpack.c.b16 %v1076, %v1072
        %v1221 = vpack.c.b16 %v1077, %v1073
        %v1222 = vpack.c.b16 %v1078, %v1074
        %v1223 = vpack.c.b16 %v1079, %v1075
        %v1224 = vpack.c.b16 %v1084, %v1080
        %v1225 = vpack.c.b16 %v1085, %v1081
        %v1226 = vpack.c.b16 %v1086, %v1082
        %v1227 = vpack.c.b16 %v1087, %v1083
        %v1228 = vpack.c.b16 %v1092, %v1088
        %v1229 = vpack.c.b16 %v1093, %v1089
        %v1230 = vpack.c.b16 %v1094, %v1090
        %v1231 = vpack.c.b16 %v1095, %v1091
        %v1232 = vpack.c.b16 %v1100, %v1096
        %v1233 = vpack.c.b16 %v1101, %v1097
        %v1234 = vpack.c.b16 %v1102, %v1098
        %v1235 = vpack.c.b16 %v1103, %v1099
        %v1236 = vpack.c.b16 %v1108, %v1104
        %v1237 = vpack.c.b16 %v1109, %v1105
        %v1238 = vpack.c.b16 %v1110, %v1106
        %v1239 = vpack.c.b16 %v1111, %v1107
        %1368 = vmatprep.subr.bf16.mxu0 %v1113
        %1369 = vmatpush1.bf16.msra.mxu0 %v1112
        %1370 = vmatprep.subr.bf16.mxu0 %v1117
        %1371 = vmatpush1.bf16.msra.mxu0 %v1116
        %1372 = vmatprep.subr.bf16.mxu0 %v1121
        %1373 = vmatpush1.bf16.msra.mxu0 %v1120
        %1374 = vmatprep.subr.bf16.mxu0 %v1125
        %1375 = vmatpush1.bf16.msra.mxu0 %v1124
        %1376 = vmatprep.subr.bf16.mxu0 %v1129
        %1377 = vmatpush1.bf16.msra.mxu0 %v1128
        %1378 = vmatprep.subr.bf16.mxu0 %v1133
        %1379 = vmatpush1.bf16.msra.mxu0 %v1132
        %1380 = vmatprep.subr.bf16.mxu0 %v1137
        %1381 = vmatpush1.bf16.msra.mxu0 %v1136
        %1382 = vmatprep.subr.bf16.mxu0 %v1141
        %1383 = vmatpush1.bf16.msra.mxu0 %v1140
        %1384 = vmatprep.subr.bf16.mxu0 %v1145
        %1385 = vmatpush1.bf16.msra.mxu0 %v1144
        %1386 = vmatprep.subr.bf16.mxu0 %v1149
        %1387 = vmatpush1.bf16.msra.mxu0 %v1148
        %1388 = vmatprep.subr.bf16.mxu0 %v1153
        %1389 = vmatpush1.bf16.msra.mxu0 %v1152
        %1390 = vmatprep.subr.bf16.mxu0 %v1157
        %1391 = vmatpush1.bf16.msra.mxu0 %v1156
        %1392 = vmatprep.subr.bf16.mxu0 %v1161
        %1393 = vmatpush1.bf16.msra.mxu0 %v1160
        %1394 = vmatprep.subr.bf16.mxu0 %v1165
        %1395 = vmatpush1.bf16.msra.mxu0 %v1164
        %1396 = vmatprep.subr.bf16.mxu0 %v1169
        %1397 = vmatpush1.bf16.msra.mxu0 %v1168
        %1398 = vmatprep.subr.bf16.mxu0 %v1173
        %1399 = vmatpush1.bf16.msra.mxu0 %v1172
        %1400 = vmatprep.mubr.bf16.mxu0 %v721
        %1401 = vmatmul.mubr.bf16.gmra.mrb[0].mxu0 %v720
        %v1402 = vpop.f32.mrb[0].mxu0
        %v1403 = vadd.f32 0.0, %v1402
        %v1404 = vpop.f32.mrb[0].mxu0
        %v1405 = vadd.f32 0.0, %v1404
        %v1406 = vpop.f32.mrb[0].mxu0
        %v1407 = vpop.f32.mrb[0].mxu0
        %1408 = vdwg.mxu0
        %1409 = vmatprep.subr.bf16.mxu0 %v1177
        %1410 = vmatpush1.bf16.msra.mxu0 %v1176
        %1411 = vmatprep.subr.bf16.mxu0 %v1181
        %1412 = vmatpush1.bf16.msra.mxu0 %v1180
        %1413 = vmatprep.subr.bf16.mxu0 %v1185
        %1414 = vmatpush1.bf16.msra.mxu0 %v1184
        %1415 = vmatprep.subr.bf16.mxu0 %v1189
        %1416 = vmatpush1.bf16.msra.mxu0 %v1188
        %1417 = vmatprep.subr.bf16.mxu0 %v1193
        %1418 = vmatpush1.bf16.msra.mxu0 %v1192
        %1419 = vmatprep.subr.bf16.mxu0 %v1197
        %1420 = vmatpush1.bf16.msra.mxu0 %v1196
        %1421 = vmatprep.subr.bf16.mxu0 %v1201
        %1422 = vmatpush1.bf16.msra.mxu0 %v1200
        %1423 = vmatprep.subr.bf16.mxu0 %v1205
        %1424 = vmatpush1.bf16.msra.mxu0 %v1204
        %1425 = vmatprep.subr.bf16.mxu0 %v1209
        %1426 = vmatpush1.bf16.msra.mxu0 %v1208
        %1427 = vmatprep.subr.bf16.mxu0 %v1213
        %1428 = vmatpush1.bf16.msra.mxu0 %v1212
        %1429 = vmatprep.subr.bf16.mxu0 %v1217
        %1430 = vmatpush1.bf16.msra.mxu0 %v1216
        %1431 = vmatprep.subr.bf16.mxu0 %v1221
        %1432 = vmatpush1.bf16.msra.mxu0 %v1220
        %1433 = vmatprep.subr.bf16.mxu0 %v1225
        %1434 = vmatpush1.bf16.msra.mxu0 %v1224
        %1435 = vmatprep.subr.bf16.mxu0 %v1229
        %1436 = vmatpush1.bf16.msra.mxu0 %v1228
        %1437 = vmatprep.subr.bf16.mxu0 %v1233
        %1438 = vmatpush1.bf16.msra.mxu0 %v1232
        %1439 = vmatprep.subr.bf16.mxu0 %v1237
        %1440 = vmatpush1.bf16.msra.mxu0 %v1236
        %1441 = vmatprep.mubr.bf16.mxu0 %v723
        %1442 = vmatmul.mubr.bf16.gmra.mrb[0].mxu0 %v722
        %v1443 = vpop.f32.mrb[0].mxu0
        %v1444 = vadd.f32 %v1403, %v1443
        %v1445 = vpop.f32.mrb[0].mxu0
        %v1446 = vadd.f32 %v1405, %v1445
        %v1447 = vpop.f32.mrb[0].mxu0
        %v1448 = vpop.f32.mrb[0].mxu0
        %1449 = vdwg.mxu0
        %1450 = vmatprep.subr.bf16.mxu0 %v1115
        %1451 = vmatpush1.bf16.msra.mxu0 %v1114
        %1452 = vmatprep.subr.bf16.mxu0 %v1119
        %1453 = vmatpush1.bf16.msra.mxu0 %v1118
        %1454 = vmatprep.subr.bf16.mxu0 %v1123
        %1455 = vmatpush1.bf16.msra.mxu0 %v1122
        %1456 = vmatprep.subr.bf16.mxu0 %v1127
        %1457 = vmatpush1.bf16.msra.mxu0 %v1126
        %1458 = vmatprep.subr.bf16.mxu0 %v1131
        %1459 = vmatpush1.bf16.msra.mxu0 %v1130
        %1460 = vmatprep.subr.bf16.mxu0 %v1135
        %1461 = vmatpush1.bf16.msra.mxu0 %v1134
        %1462 = vmatprep.subr.bf16.mxu0 %v1139
        %1463 = vmatpush1.bf16.msra.mxu0 %v1138
        %1464 = vmatprep.subr.bf16.mxu0 %v1143
        %1465 = vmatpush1.bf16.msra.mxu0 %v1142
        %1466 = vmatprep.subr.bf16.mxu0 %v1147
        %1467 = vmatpush1.bf16.msra.mxu0 %v1146
        %1468 = vmatprep.subr.bf16.mxu0 %v1151
        %1469 = vmatpush1.bf16.msra.mxu0 %v1150
        %1470 = vmatprep.subr.bf16.mxu0 %v1155
        %1471 = vmatpush1.bf16.msra.mxu0 %v1154
        %1472 = vmatprep.subr.bf16.mxu0 %v1159
        %1473 = vmatpush1.bf16.msra.mxu0 %v1158
        %1474 = vmatprep.subr.bf16.mxu0 %v1163
        %1475 = vmatpush1.bf16.msra.mxu0 %v1162
        %1476 = vmatprep.subr.bf16.mxu0 %v1167
        %1477 = vmatpush1.bf16.msra.mxu0 %v1166
        %1478 = vmatprep.subr.bf16.mxu0 %v1171
        %1479 = vmatpush1.bf16.msra.mxu0 %v1170
        %1480 = vmatprep.subr.bf16.mxu0 %v1175
        %1481 = vmatpush1.bf16.msra.mxu0 %v1174
        %1482 = vmatprep.mubr.bf16.mxu0 %v721
        %1483 = vmatmul.mubr.bf16.gmra.mrb[0].mxu0 %v720
        %v1484 = vpop.f32.mrb[0].mxu0
        %v1485 = vadd.f32 0.0, %v1484
        %v1486 = vpop.f32.mrb[0].mxu0
        %v1487 = vadd.f32 0.0, %v1486
        %v1488 = vpop.f32.mrb[0].mxu0
        %v1489 = vpop.f32.mrb[0].mxu0
        %1490 = vdwg.mxu0
        %1491 = vmatprep.subr.bf16.mxu0 %v1179
        %1492 = vmatpush1.bf16.msra.mxu0 %v1178
        %1493 = vmatprep.subr.bf16.mxu0 %v1183
        %1494 = vmatpush1.bf16.msra.mxu0 %v1182
        %1495 = vmatprep.subr.bf16.mxu0 %v1187
        %1496 = vmatpush1.bf16.msra.mxu0 %v1186
        %1497 = vmatprep.subr.bf16.mxu0 %v1191
        %1498 = vmatpush1.bf16.msra.mxu0 %v1190
        %1499 = vmatprep.subr.bf16.mxu0 %v1195
        %1500 = vmatpush1.bf16.msra.mxu0 %v1194
        %1501 = vmatprep.subr.bf16.mxu0 %v1199
        %1502 = vmatpush1.bf16.msra.mxu0 %v1198
        %1503 = vmatprep.subr.bf16.mxu0 %v1203
        %1504 = vmatpush1.bf16.msra.mxu0 %v1202
        %1505 = vmatprep.subr.bf16.mxu0 %v1207
        %1506 = vmatpush1.bf16.msra.mxu0 %v1206
        %1507 = vmatprep.subr.bf16.mxu0 %v1211
        %1508 = vmatpush1.bf16.msra.mxu0 %v1210
        %1509 = vmatprep.subr.bf16.mxu0 %v1215
        %1510 = vmatpush1.bf16.msra.mxu0 %v1214
        %1511 = vmatprep.subr.bf16.mxu0 %v1219
        %1512 = vmatpush1.bf16.msra.mxu0 %v1218
        %1513 = vmatprep.subr.bf16.mxu0 %v1223
        %1514 = vmatpush1.bf16.msra.mxu0 %v1222
        %1515 = vmatprep.subr.bf16.mxu0 %v1227
        %1516 = vmatpush1.bf16.msra.mxu0 %v1226
        %1517 = vmatprep.subr.bf16.mxu0 %v1231
        %1518 = vmatpush1.bf16.msra.mxu0 %v1230
        %1519 = vmatprep.subr.bf16.mxu0 %v1235
        %1520 = vmatpush1.bf16.msra.mxu0 %v1234
        %1521 = vmatprep.subr.bf16.mxu0 %v1239
        %1522 = vmatpush1.bf16.msra.mxu0 %v1238
        %1523 = vmatprep.mubr.bf16.mxu0 %v723
        %1524 = vmatmul.mubr.bf16.gmra.mrb[0].mxu0 %v722
        %v1525 = vpop.f32.mrb[0].mxu0
        %v1526 = vadd.f32 %v1485, %v1525
        %v1527 = vpop.f32.mrb[0].mxu0
        %v1528 = vadd.f32 %v1487, %v1527
        %v1529 = vpop.f32.mrb[0].mxu0
        %v1530 = vpop.f32.mrb[0].mxu0
        %1531 = vdwg.mxu0
        %v1532 = vadd.f32 %v577, %v1444
        %v1533 = vadd.f32 %v578, %v1446
        %v1534 = vadd.f32 %v579, %v1526
        %v1535 = vadd.f32 %v580, %v1528
        %1536 = vst [vmem:[%s543] sm:$0xff] %v1532
        %1537 = vst [vmem:[%s543 + $0x8] sm:$0xff] %v1533
        %1538 = vst [vmem:[%s543 + $0x10] sm:$0xff] %v1534
        %1539 = vst [vmem:[%s543 + $0x18] sm:$0xff] %v1535
        %s1540 = sld [smem:[#allocation3 + %s31]]
        %s1541 = smul.u32 4, %s1540
        %p1542 = scmp.lt.s32.totalorder %s30, 0
        %s1543 = scalar_select %p1542, %s30, 0
        %p1544 = scmp.lt.s32.totalorder %s1541, 7
        %s1545 = scalar_select %p1544, %s1541, 7
        %s1546 = smul.addr %s1543, 8
        %s1547 = sadd.s32 %s1545, %s1546
        %s1548 = smul.addr %s1547, 8
        %s1549 = scalar_lea.vmem %s5, %s1548
        // Predicated region
        $region60: #{forward.1} parent=50 // pred_check
          %p1550 = pneg %p146
        $region61: #{forward.1} parent=50 // pred_check_branch
          %1552 = sbr.rel (%p1550) target = $region63
        $region62: #{forward.1} parent=50 // pred_region
          %s1553 = sld [smem:[#allocation3 + %s31]]
          %s1554 = smul.u32 4, %s1553
        $region63: #{forward.1} parent=50 // pred_fallthru
          _
      $region51: #{forward.1} parent=5 // pred_fallthru
        _
      %p1555 = scmp.le.s32.totalorder 2, %s21
      // Predicated region
      $region64: #{forward.1} parent=5 // pred_check
        %p1556 = pneg %p1555
      $region65: #{forward.1} parent=5 // pred_check_branch
        %1558 = sbr.rel (%p1556) target = $region67
      $region66: #{forward.1} parent=5 // pred_region
        %s1559 = ssub.s32 %s21, 2
        // Predicated region
        $region68: #{forward.1} parent=66 // pred_check
          %p1560 = pneg %p152
        $region69: #{forward.1} parent=66 // pred_check_branch
          %1562 = sbr.rel (%p1560) target = $region71
        $region70: #{forward.1} parent=66 // pred_region
          %s1563 = sld [smem:[#allocation3 + %s33]]
          %s1564 = smul.u32 4, %s1563
          %p1565 = scmp.lt.s32.totalorder %s32, 0
          %s1566 = scalar_select %p1565, %s32, 0
          %p1567 = scmp.lt.s32.totalorder %s1564, 7
          %s1568 = scalar_select %p1567, %s1564, 7
          %s1569 = smul.addr %s1566, 8
          %s1570 = sadd.s32 %s1568, %s1569
          %s1571 = smul.addr %s1570, 8
          %s1572 = scalar_lea.vmem %s5, %s1571
        $region71: #{forward.1} parent=66 // pred_fallthru
          _
      $region67: #{forward.1} parent=5 // pred_fallthru
        _
    $region6: #{forward.1} parent=1 // loop_footer
      %s25 = sadd.s32 1, %s21
    $region7: #{forward.1} parent=1 // loop_footer_branch
      %20 = sbr.rel target = $region3
    $region8: #{forward.1} parent=1 // loop_exit
      _

</llo_original>
